<compile_context>
chip_gen: v6e
topology: v6e:2x2x1
jax: 0.10.0
libtpu: 0.0.40
codegen_flags: <defaults>
</compile_context>

<pallas_src>
import functools

import jax
import jax.numpy as jnp
from jax.experimental import pallas as pl
from jax.experimental.pallas import tpu as pltpu


def _mhca_kernel(x_ref, cond_ref, wq_ref, bq_ref, wkv_ref, bkv_ref,
                 wo_ref, bo_ref, o_ref, *, num_heads, head_dim):
    dt = x_ref.dtype
    C = num_heads * head_dim
    scale = head_dim ** -0.5

    xb = x_ref[0]                      # (tN, C)  native dtype
    cb = cond_ref[0]                   # (Nc, C)  native dtype

    # ---- Q / KV projections (MXU: native-dtype operands, f32 accumulate) ----
    q = jnp.dot(xb, wq_ref[...], preferred_element_type=jnp.float32)
    q = q + bq_ref[...].astype(jnp.float32)                      # (tN, C) f32
    kv = jnp.dot(cb, wkv_ref[...], preferred_element_type=jnp.float32)
    kv = kv + bkv_ref[...].astype(jnp.float32)                   # (Nc, 2C) f32
    k = kv[:, :C]
    v = kv[:, C:]

    # ---- per-head attention (mask=None: every query sees all Nc tokens) ----
    outs = []
    for h in range(num_heads):                                   # static unroll
        sl = slice(h * head_dim, (h + 1) * head_dim)
        qh = q[:, sl].astype(dt)                                 # (tN, D)
        kh = k[:, sl].astype(dt)                                 # (Nc, D)
        vh = v[:, sl].astype(dt)                                 # (Nc, D)

        # scores = qh @ kh^T : contract head_dim directly (no transpose copy).
        s = jax.lax.dot_general(qh, kh, (((1,), (1,)), ((), ())),
                                preferred_element_type=jnp.float32)
        s = s * scale                                            # (tN, Nc) f32

        m = jnp.max(s, axis=-1, keepdims=True)                   # (tN, 1)
        p = jnp.exp(s - m)                                       # EUP
        l = jnp.sum(p, axis=-1, keepdims=True)                   # (tN, 1)
        oh = jnp.dot(p.astype(dt), vh, preferred_element_type=jnp.float32)
        outs.append(oh / l)                                      # (tN, D) f32

    o_cat = jnp.concatenate(outs, axis=-1).astype(dt)            # (tN, C)

    # ---- output projection ----
    out = jnp.dot(o_cat, wo_ref[...], preferred_element_type=jnp.float32)
    out = out + bo_ref[...].astype(jnp.float32)
    o_ref[0] = out.astype(o_ref.dtype)


def mhca_forward(x, cond, wq, bq, wkv, bkv, wo, bo, *, num_heads, q_tile=256):
    """x: (B,N,C); cond: (B,Nc,C); weights stored pre-transposed as (in, out)."""
    B, N, C = x.shape
    Bc, Nc, Cc = cond.shape
    assert Bc == B and Cc == C and C % num_heads == 0
    head_dim = C // num_heads

    tN = min(q_tile, N)
    if N % tN != 0:                 # keep blocks exact (no partial tiles)
        tN = N
    grid = (B, N // tN)

    bq2 = bq.reshape(1, C)
    bkv2 = bkv.reshape(1, 2 * C)
    bo2 = bo.reshape(1, C)

    kernel = functools.partial(_mhca_kernel, num_heads=num_heads,
                               head_dim=head_dim)

    return pl.pallas_call(
        kernel,
        out_shape=jax.ShapeDtypeStruct((B, N, C), x.dtype),
        grid_spec=pltpu.PrefetchScalarGridSpec(
            num_scalar_prefetch=0,
            grid=grid,
            in_specs=[
                pl.BlockSpec((1, tN, C), lambda b, t: (b, t, 0)),    # x tile
                pl.BlockSpec((1, Nc, C), lambda b, t: (b, 0, 0)),    # cond
                pl.BlockSpec((C, C), lambda b, t: (0, 0)),           # Wq
                pl.BlockSpec((1, C), lambda b, t: (0, 0)),           # bq
                pl.BlockSpec((C, 2 * C), lambda b, t: (0, 0)),       # Wkv
                pl.BlockSpec((1, 2 * C), lambda b, t: (0, 0)),       # bkv
                pl.BlockSpec((C, C), lambda b, t: (0, 0)),           # Wproj
                pl.BlockSpec((1, C), lambda b, t: (0, 0)),           # bproj
            ],
            out_specs=pl.BlockSpec((1, tN, C), lambda b, t: (b, t, 0)),
        ),
        compiler_params=pltpu.CompilerParams(
            dimension_semantics=("parallel", "parallel")),
    )(x, cond, wq, bq2, wkv, bkv2, wo, bo2)


def reference_forward(x, cond, wq, bq, wkv, bkv, wo, bo, *, num_heads):
    """Pure-JAX reference mirroring the PyTorch module (mask=None, p=0)."""
    B, N, C = x.shape
    Nc = cond.shape[1]
    D = C // num_heads
    q = (x @ wq + bq).reshape(B, N, num_heads, D)
    kv = cond @ wkv + bkv
    k = kv[..., :C].reshape(B, Nc, num_heads, D)
    v = kv[..., C:].reshape(B, Nc, num_heads, D)
    s = jnp.einsum('bnhd,bmhd->bhnm', q, k) * (D ** -0.5)
    p = jax.nn.softmax(s, axis=-1)
    o = jnp.einsum('bhnm,bmhd->bnhd', p, v).reshape(B, N, C)
    return (o @ wo + bo).astype(x.dtype)


if __name__ == "__main__":
    # Small shapes consistent with MultiHeadCrossAttention(d_model, num_heads)
    B, N, Nc = 2, 8, 16
    d_model, num_heads = 32, 4

    key = jax.random.PRNGKey(0)
    kx, kc, k1, k2, k3, k4, k5, k6 = jax.random.split(key, 8)

    x = jax.random.normal(kx, (B, N, d_model), dtype=jnp.float32)
    cond = jax.random.normal(kc, (B, Nc, d_model), dtype=jnp.float32)

    # Parameters stored pre-transposed: (in_features, out_features).
    wq = jax.random.normal(k1, (d_model, d_model), dtype=jnp.float32) * 0.05
    bq = jax.random.normal(k2, (d_model,), dtype=jnp.float32) * 0.05
    wkv = jax.random.normal(k3, (d_model, 2 * d_model), dtype=jnp.float32) * 0.05
    bkv = jax.random.normal(k4, (2 * d_model,), dtype=jnp.float32) * 0.05
    wo = jax.random.normal(k5, (d_model, d_model), dtype=jnp.float32) * 0.05
    bo = jax.random.normal(k6, (d_model,), dtype=jnp.float32) * 0.05

    out = mhca_forward(x, cond, wq, bq, wkv, bkv, wo, bo, num_heads=num_heads)
    out = jax.block_until_ready(out)

    ref = reference_forward(x, cond, wq, bq, wkv, bkv, wo, bo,
                            num_heads=num_heads)
    assert out.shape == (B, N, d_model)
    assert jnp.allclose(out, ref, atol=1e-3, rtol=1e-3), \
        "mismatch vs pure-JAX reference"

    print("KERNEL_OK")
</pallas_src>

<mosaic_0001>
module attributes {stable_mosaic.version = 11 : i64} {
  func.func @_mhca_kernel(%arg0: i32, %arg1: i32, %arg2: memref<1x8x32xf32, #tpu.memory_space<vmem>>, %arg3: memref<1x16x32xf32, #tpu.memory_space<vmem>>, %arg4: memref<32x32xf32, #tpu.memory_space<vmem>>, %arg5: memref<1x32xf32, #tpu.memory_space<vmem>>, %arg6: memref<32x64xf32, #tpu.memory_space<vmem>>, %arg7: memref<1x64xf32, #tpu.memory_space<vmem>>, %arg8: memref<32x32xf32, #tpu.memory_space<vmem>>, %arg9: memref<1x32xf32, #tpu.memory_space<vmem>>, %arg10: memref<1x8x32xf32, #tpu.memory_space<vmem>>) attributes {dimension_semantics = [#tpu.dimension_semantics<parallel>, #tpu.dimension_semantics<parallel>], iteration_bounds = array<i64: 2, 1>, scalar_prefetch = 0 : i64, scratch_operands = 0 : i64, tpu.core_type = #tpu.core_type<tc>, window_params = [{transform_indices = @transform_0, window_bounds = array<i64: 1, 8, 32>}, {transform_indices = @transform_1, window_bounds = array<i64: 1, 16, 32>}, {pipeline_mode = #tpu.pipeline_mode<synchronous>, transform_indices = @transform_2, window_bounds = array<i64: 32, 32>}, {pipeline_mode = #tpu.pipeline_mode<synchronous>, transform_indices = @transform_3, window_bounds = array<i64: 1, 32>}, {pipeline_mode = #tpu.pipeline_mode<synchronous>, transform_indices = @transform_4, window_bounds = array<i64: 32, 64>}, {pipeline_mode = #tpu.pipeline_mode<synchronous>, transform_indices = @transform_5, window_bounds = array<i64: 1, 64>}, {pipeline_mode = #tpu.pipeline_mode<synchronous>, transform_indices = @transform_6, window_bounds = array<i64: 32, 32>}, {pipeline_mode = #tpu.pipeline_mode<synchronous>, transform_indices = @transform_7, window_bounds = array<i64: 1, 32>}, {transform_indices = @transform_8, window_bounds = array<i64: 1, 8, 32>}]} {
    %c0 = arith.constant 0 : index
    %c0_0 = arith.constant 0 : index
    %c0_1 = arith.constant 0 : index
    %0 = vector.load %arg2[%c0, %c0_0, %c0_1] : memref<1x8x32xf32, #tpu.memory_space<vmem>>, vector<1x8x32xf32>
    %1 = vector.shape_cast %0 : vector<1x8x32xf32> to vector<8x32xf32>
    %c0_2 = arith.constant 0 : index
    %c0_3 = arith.constant 0 : index
    %c0_4 = arith.constant 0 : index
    %2 = vector.load %arg3[%c0_2, %c0_3, %c0_4] : memref<1x16x32xf32, #tpu.memory_space<vmem>>, vector<1x16x32xf32>
    %3 = vector.shape_cast %2 : vector<1x16x32xf32> to vector<16x32xf32>
    %c0_5 = arith.constant 0 : index
    %c0_6 = arith.constant 0 : index
    %4 = vector.load %arg4[%c0_5, %c0_6] : memref<32x32xf32, #tpu.memory_space<vmem>>, vector<32x32xf32>
    %cst = arith.constant dense<0.000000e+00> : vector<8x32xf32>
    %5 = tpu.matmul %1, %4, %cst {dimension_numbers = #tpu.dot_dimension_numbers<[1], [0], [0], [1], [0, 0, 1, 1], [], []>} : vector<8x32xf32>, vector<32x32xf32>, vector<8x32xf32> -> vector<8x32xf32>
    %c0_7 = arith.constant 0 : index
    %c0_8 = arith.constant 0 : index
    %6 = vector.load %arg5[%c0_7, %c0_8] : memref<1x32xf32, #tpu.memory_space<vmem>>, vector<1x32xf32>
    %7 = vector.broadcast %6 : vector<1x32xf32> to vector<8x32xf32>
    %8 = arith.addf %5, %7 : vector<8x32xf32>
    %c0_9 = arith.constant 0 : index
    %c0_10 = arith.constant 0 : index
    %9 = vector.load %arg6[%c0_9, %c0_10] : memref<32x64xf32, #tpu.memory_space<vmem>>, vector<32x64xf32>
    %cst_11 = arith.constant dense<0.000000e+00> : vector<16x64xf32>
    %10 = tpu.matmul %3, %9, %cst_11 {dimension_numbers = #tpu.dot_dimension_numbers<[1], [0], [0], [1], [0, 0, 1, 1], [], []>} : vector<16x32xf32>, vector<32x64xf32>, vector<16x64xf32> -> vector<16x64xf32>
    %c0_12 = arith.constant 0 : index
    %c0_13 = arith.constant 0 : index
    %11 = vector.load %arg7[%c0_12, %c0_13] : memref<1x64xf32, #tpu.memory_space<vmem>>, vector<1x64xf32>
    %12 = vector.broadcast %11 : vector<1x64xf32> to vector<16x64xf32>
    %13 = arith.addf %10, %12 : vector<16x64xf32>
    %14 = vector.extract_strided_slice %13 {offsets = [0, 0], sizes = [16, 32], strides = [1, 1]} : vector<16x64xf32> to vector<16x32xf32>
    %15 = vector.extract_strided_slice %13 {offsets = [0, 32], sizes = [16, 32], strides = [1, 1]} : vector<16x64xf32> to vector<16x32xf32>
    %16 = vector.extract_strided_slice %8 {offsets = [0, 0], sizes = [8, 8], strides = [1, 1]} : vector<8x32xf32> to vector<8x8xf32>
    %17 = vector.extract_strided_slice %14 {offsets = [0, 0], sizes = [16, 8], strides = [1, 1]} : vector<16x32xf32> to vector<16x8xf32>
    %18 = vector.extract_strided_slice %15 {offsets = [0, 0], sizes = [16, 8], strides = [1, 1]} : vector<16x32xf32> to vector<16x8xf32>
    %cst_14 = arith.constant dense<0.000000e+00> : vector<8x16xf32>
    %19 = tpu.matmul %16, %17, %cst_14 {dimension_numbers = #tpu.dot_dimension_numbers<[1], [1], [0], [0], [0, 0, 1, 0], [], []>} : vector<8x8xf32>, vector<16x8xf32>, vector<8x16xf32> -> vector<8x16xf32>
    %cst_15 = arith.constant 0.353553385 : f32
    %20 = vector.broadcast %cst_15 : f32 to vector<8x16xf32>
    %21 = arith.mulf %19, %20 : vector<8x16xf32>
    %cst_16 = arith.constant dense<0xFF800000> : vector<8xf32>
    %22 = vector.multi_reduction <maximumf>, %21, %cst_16 [1] : vector<8x16xf32> to vector<8xf32>
    %23 = vector.shape_cast %22 : vector<8xf32> to vector<8x1xf32>
    %24 = vector.broadcast %23 : vector<8x1xf32> to vector<8x16xf32>
    %25 = arith.subf %21, %24 : vector<8x16xf32>
    %26 = math.exp %25 : vector<8x16xf32>
    %cst_17 = arith.constant dense<0.000000e+00> : vector<8xf32>
    %27 = vector.multi_reduction <add>, %26, %cst_17 [1] : vector<8x16xf32> to vector<8xf32>
    %28 = vector.shape_cast %27 : vector<8xf32> to vector<8x1xf32>
    %cst_18 = arith.constant dense<0.000000e+00> : vector<8x8xf32>
    %29 = tpu.matmul %26, %18, %cst_18 {dimension_numbers = #tpu.dot_dimension_numbers<[1], [0], [0], [1], [0, 0, 1, 1], [], []>} : vector<8x16xf32>, vector<16x8xf32>, vector<8x8xf32> -> vector<8x8xf32>
    %30 = vector.broadcast %28 : vector<8x1xf32> to vector<8x8xf32>
    %31 = arith.divf %29, %30 : vector<8x8xf32>
    %32 = vector.extract_strided_slice %8 {offsets = [0, 8], sizes = [8, 8], strides = [1, 1]} : vector<8x32xf32> to vector<8x8xf32>
    %33 = vector.extract_strided_slice %14 {offsets = [0, 8], sizes = [16, 8], strides = [1, 1]} : vector<16x32xf32> to vector<16x8xf32>
    %34 = vector.extract_strided_slice %15 {offsets = [0, 8], sizes = [16, 8], strides = [1, 1]} : vector<16x32xf32> to vector<16x8xf32>
    %cst_19 = arith.constant dense<0.000000e+00> : vector<8x16xf32>
    %35 = tpu.matmul %32, %33, %cst_19 {dimension_numbers = #tpu.dot_dimension_numbers<[1], [1], [0], [0], [0, 0, 1, 0], [], []>} : vector<8x8xf32>, vector<16x8xf32>, vector<8x16xf32> -> vector<8x16xf32>
    %cst_20 = arith.constant 0.353553385 : f32
    %36 = vector.broadcast %cst_20 : f32 to vector<8x16xf32>
    %37 = arith.mulf %35, %36 : vector<8x16xf32>
    %cst_21 = arith.constant dense<0xFF800000> : vector<8xf32>
    %38 = vector.multi_reduction <maximumf>, %37, %cst_21 [1] : vector<8x16xf32> to vector<8xf32>
    %39 = vector.shape_cast %38 : vector<8xf32> to vector<8x1xf32>
    %40 = vector.broadcast %39 : vector<8x1xf32> to vector<8x16xf32>
    %41 = arith.subf %37, %40 : vector<8x16xf32>
    %42 = math.exp %41 : vector<8x16xf32>
    %cst_22 = arith.constant dense<0.000000e+00> : vector<8xf32>
    %43 = vector.multi_reduction <add>, %42, %cst_22 [1] : vector<8x16xf32> to vector<8xf32>
    %44 = vector.shape_cast %43 : vector<8xf32> to vector<8x1xf32>
    %cst_23 = arith.constant dense<0.000000e+00> : vector<8x8xf32>
    %45 = tpu.matmul %42, %34, %cst_23 {dimension_numbers = #tpu.dot_dimension_numbers<[1], [0], [0], [1], [0, 0, 1, 1], [], []>} : vector<8x16xf32>, vector<16x8xf32>, vector<8x8xf32> -> vector<8x8xf32>
    %46 = vector.broadcast %44 : vector<8x1xf32> to vector<8x8xf32>
    %47 = arith.divf %45, %46 : vector<8x8xf32>
    %48 = vector.extract_strided_slice %8 {offsets = [0, 16], sizes = [8, 8], strides = [1, 1]} : vector<8x32xf32> to vector<8x8xf32>
    %49 = vector.extract_strided_slice %14 {offsets = [0, 16], sizes = [16, 8], strides = [1, 1]} : vector<16x32xf32> to vector<16x8xf32>
    %50 = vector.extract_strided_slice %15 {offsets = [0, 16], sizes = [16, 8], strides = [1, 1]} : vector<16x32xf32> to vector<16x8xf32>
    %cst_24 = arith.constant dense<0.000000e+00> : vector<8x16xf32>
    %51 = tpu.matmul %48, %49, %cst_24 {dimension_numbers = #tpu.dot_dimension_numbers<[1], [1], [0], [0], [0, 0, 1, 0], [], []>} : vector<8x8xf32>, vector<16x8xf32>, vector<8x16xf32> -> vector<8x16xf32>
    %cst_25 = arith.constant 0.353553385 : f32
    %52 = vector.broadcast %cst_25 : f32 to vector<8x16xf32>
    %53 = arith.mulf %51, %52 : vector<8x16xf32>
    %cst_26 = arith.constant dense<0xFF800000> : vector<8xf32>
    %54 = vector.multi_reduction <maximumf>, %53, %cst_26 [1] : vector<8x16xf32> to vector<8xf32>
    %55 = vector.shape_cast %54 : vector<8xf32> to vector<8x1xf32>
    %56 = vector.broadcast %55 : vector<8x1xf32> to vector<8x16xf32>
    %57 = arith.subf %53, %56 : vector<8x16xf32>
    %58 = math.exp %57 : vector<8x16xf32>
    %cst_27 = arith.constant dense<0.000000e+00> : vector<8xf32>
    %59 = vector.multi_reduction <add>, %58, %cst_27 [1] : vector<8x16xf32> to vector<8xf32>
    %60 = vector.shape_cast %59 : vector<8xf32> to vector<8x1xf32>
    %cst_28 = arith.constant dense<0.000000e+00> : vector<8x8xf32>
    %61 = tpu.matmul %58, %50, %cst_28 {dimension_numbers = #tpu.dot_dimension_numbers<[1], [0], [0], [1], [0, 0, 1, 1], [], []>} : vector<8x16xf32>, vector<16x8xf32>, vector<8x8xf32> -> vector<8x8xf32>
    %62 = vector.broadcast %60 : vector<8x1xf32> to vector<8x8xf32>
    %63 = arith.divf %61, %62 : vector<8x8xf32>
    %64 = vector.extract_strided_slice %8 {offsets = [0, 24], sizes = [8, 8], strides = [1, 1]} : vector<8x32xf32> to vector<8x8xf32>
    %65 = vector.extract_strided_slice %14 {offsets = [0, 24], sizes = [16, 8], strides = [1, 1]} : vector<16x32xf32> to vector<16x8xf32>
    %66 = vector.extract_strided_slice %15 {offsets = [0, 24], sizes = [16, 8], strides = [1, 1]} : vector<16x32xf32> to vector<16x8xf32>
    %cst_29 = arith.constant dense<0.000000e+00> : vector<8x16xf32>
    %67 = tpu.matmul %64, %65, %cst_29 {dimension_numbers = #tpu.dot_dimension_numbers<[1], [1], [0], [0], [0, 0, 1, 0], [], []>} : vector<8x8xf32>, vector<16x8xf32>, vector<8x16xf32> -> vector<8x16xf32>
    %cst_30 = arith.constant 0.353553385 : f32
    %68 = vector.broadcast %cst_30 : f32 to vector<8x16xf32>
    %69 = arith.mulf %67, %68 : vector<8x16xf32>
    %cst_31 = arith.constant dense<0xFF800000> : vector<8xf32>
    %70 = vector.multi_reduction <maximumf>, %69, %cst_31 [1] : vector<8x16xf32> to vector<8xf32>
    %71 = vector.shape_cast %70 : vector<8xf32> to vector<8x1xf32>
    %72 = vector.broadcast %71 : vector<8x1xf32> to vector<8x16xf32>
    %73 = arith.subf %69, %72 : vector<8x16xf32>
    %74 = math.exp %73 : vector<8x16xf32>
    %cst_32 = arith.constant dense<0.000000e+00> : vector<8xf32>
    %75 = vector.multi_reduction <add>, %74, %cst_32 [1] : vector<8x16xf32> to vector<8xf32>
    %76 = vector.shape_cast %75 : vector<8xf32> to vector<8x1xf32>
    %cst_33 = arith.constant dense<0.000000e+00> : vector<8x8xf32>
    %77 = tpu.matmul %74, %66, %cst_33 {dimension_numbers = #tpu.dot_dimension_numbers<[1], [0], [0], [1], [0, 0, 1, 1], [], []>} : vector<8x16xf32>, vector<16x8xf32>, vector<8x8xf32> -> vector<8x8xf32>
    %78 = vector.broadcast %76 : vector<8x1xf32> to vector<8x8xf32>
    %79 = arith.divf %77, %78 : vector<8x8xf32>
    %80 = tpu.concatenate %31, %47, %63, %79 in 1 : vector<8x8xf32>, vector<8x8xf32>, vector<8x8xf32>, vector<8x8xf32> -> vector<8x32xf32>
    %c0_34 = arith.constant 0 : index
    %c0_35 = arith.constant 0 : index
    %81 = vector.load %arg8[%c0_34, %c0_35] : memref<32x32xf32, #tpu.memory_space<vmem>>, vector<32x32xf32>
    %cst_36 = arith.constant dense<0.000000e+00> : vector<8x32xf32>
    %82 = tpu.matmul %80, %81, %cst_36 {dimension_numbers = #tpu.dot_dimension_numbers<[1], [0], [0], [1], [0, 0, 1, 1], [], []>} : vector<8x32xf32>, vector<32x32xf32>, vector<8x32xf32> -> vector<8x32xf32>
    %c0_37 = arith.constant 0 : index
    %c0_38 = arith.constant 0 : index
    %83 = vector.load %arg9[%c0_37, %c0_38] : memref<1x32xf32, #tpu.memory_space<vmem>>, vector<1x32xf32>
    %84 = vector.broadcast %83 : vector<1x32xf32> to vector<8x32xf32>
    %85 = arith.addf %82, %84 : vector<8x32xf32>
    %c0_39 = arith.constant 0 : index
    %c0_40 = arith.constant 0 : index
    %c0_41 = arith.constant 0 : index
    %86 = vector.load %arg10[%c0_39, %c0_40, %c0_41] : memref<1x8x32xf32, #tpu.memory_space<vmem>>, vector<1x8x32xf32>
    %87 = vector.shape_cast %86 : vector<1x8x32xf32> to vector<8x32xf32>
    %88 = vector.shape_cast %85 : vector<8x32xf32> to vector<1x8x32xf32>
    tpu.vector_store %arg10[%c0_39, %c0_40, %c0_41], %88 {strides = array<i32>} : memref<1x8x32xf32, #tpu.memory_space<vmem>>, vector<1x8x32xf32>,
    return
  }
  func.func @transform_0(%arg0: i32, %arg1: i32) -> (i32, i32, i32) {
    %c0_i32 = arith.constant 0 : i32
    %c0_i32_0 = arith.constant 0 : i32
    return %arg0, %arg1, %c0_i32 : i32, i32, i32
  }
  func.func @transform_1(%arg0: i32, %arg1: i32) -> (i32, i32, i32) {
    %c0_i32 = arith.constant 0 : i32
    %c0_i32_0 = arith.constant 0 : i32
    %c0_i32_1 = arith.constant 0 : i32
    return %arg0, %c0_i32, %c0_i32_0 : i32, i32, i32
  }
  func.func @transform_2(%arg0: i32, %arg1: i32) -> (i32, i32) {
    %c0_i32 = arith.constant 0 : i32
    %c0_i32_0 = arith.constant 0 : i32
    %c0_i32_1 = arith.constant 0 : i32
    return %c0_i32, %c0_i32_0 : i32, i32
  }
  func.func @transform_3(%arg0: i32, %arg1: i32) -> (i32, i32) {
    %c0_i32 = arith.constant 0 : i32
    %c0_i32_0 = arith.constant 0 : i32
    %c0_i32_1 = arith.constant 0 : i32
    return %c0_i32, %c0_i32_0 : i32, i32
  }
  func.func @transform_4(%arg0: i32, %arg1: i32) -> (i32, i32) {
    %c0_i32 = arith.constant 0 : i32
    %c0_i32_0 = arith.constant 0 : i32
    %c0_i32_1 = arith.constant 0 : i32
    return %c0_i32, %c0_i32_0 : i32, i32
  }
  func.func @transform_5(%arg0: i32, %arg1: i32) -> (i32, i32) {
    %c0_i32 = arith.constant 0 : i32
    %c0_i32_0 = arith.constant 0 : i32
    %c0_i32_1 = arith.constant 0 : i32
    return %c0_i32, %c0_i32_0 : i32, i32
  }
  func.func @transform_6(%arg0: i32, %arg1: i32) -> (i32, i32) {
    %c0_i32 = arith.constant 0 : i32
    %c0_i32_0 = arith.constant 0 : i32
    %c0_i32_1 = arith.constant 0 : i32
    return %c0_i32, %c0_i32_0 : i32, i32
  }
  func.func @transform_7(%arg0: i32, %arg1: i32) -> (i32, i32) {
    %c0_i32 = arith.constant 0 : i32
    %c0_i32_0 = arith.constant 0 : i32
    %c0_i32_1 = arith.constant 0 : i32
    return %c0_i32, %c0_i32_0 : i32, i32
  }
  func.func @transform_8(%arg0: i32, %arg1: i32) -> (i32, i32, i32) {
    %c0_i32 = arith.constant 0 : i32
    %c0_i32_0 = arith.constant 0 : i32
    return %arg0, %arg1, %c0_i32 : i32, i32, i32
  }
}

</mosaic_0001>

<llo_original>
// kernel: tpu_custom_call.1
$region0: #{tpu_custom_call.1}
  #allocation0 [shape = 'u32[]', space=smem, size = 0x4, offset = 0x4, fixed_abs, tag = 'smem constant byte address 0x4 - core index']
  #allocation1 [shape = 'u32[144,128]{1,0:T(1,128)}', space=vmem, size = 0x12000, scoped, tag = 'internal scratch']
  %s0 = inlined_call_operand.hbm [shape: f32[2,8,32], index: 0, kind: input, shape index: {}]
  %s1 = inlined_call_operand.hbm [shape: f32[2,16,32], index: 1, kind: input, shape index: {}]
  %s2 = inlined_call_operand.hbm [shape: f32[32,32], index: 2, kind: input, shape index: {}]
  %s3 = inlined_call_operand.vmem [shape: f32[1,32], index: 3, kind: input, shape index: {}]
  %s4 = inlined_call_operand.hbm [shape: f32[32,64], index: 4, kind: input, shape index: {}]
  %s5 = inlined_call_operand.vmem [shape: f32[1,64], index: 5, kind: input, shape index: {}]
  %s6 = inlined_call_operand.hbm [shape: f32[32,32], index: 6, kind: input, shape index: {}]
  %s7 = inlined_call_operand.vmem [shape: f32[1,32], index: 7, kind: input, shape index: {}]
  %s8 = inlined_call_operand.hbm [shape: f32[2,8,32], index: 8, kind: output, shape index: {}]
  %s9 = sld [smem:[#allocation0]]
  $region85: #{tpu_custom_call.1} parent=0
    _
  %s11 = ssub.s32 1, %s9
  %s12 = scalar_select 0, %s11, %s9
  $region1: #{tpu_custom_call.1} parent=0
    #allocation2 [shape = 'u8[8192]{0}', space=vmem, size = 0x2000, scoped, tag = 'input window, operand 0']
    #allocation3 [shape = 's32[2]{0}', space=sflag, size = 0x8, scoped, tag = 'scoped memory for tpu_custom_call.1']
    #allocation4 [shape = 's32[2]{0}', space=sflag, size = 0x8, scoped, tag = 'scoped memory for tpu_custom_call.1']
    #allocation5 [shape = 'u8[16384]{0}', space=vmem, size = 0x4000, scoped, tag = 'input window, operand 1']
    #allocation6 [shape = 's32[2]{0}', space=sflag, size = 0x8, scoped, tag = 'scoped memory for tpu_custom_call.1']
    #allocation7 [shape = 'u8[16384]{0}', space=vmem, size = 0x4000, scoped, tag = 'input window, operand 2, single buffered']
    #allocation8 [shape = 'u8[16384]{0}', space=vmem, size = 0x4000, scoped, tag = 'input window, operand 4, single buffered']
    #allocation9 [shape = 's32[1]{0}', space=sflag, size = 0x4, scoped, tag = 'scoped memory for tpu_custom_call.1']
    #allocation10 [shape = 'u8[16384]{0}', space=vmem, size = 0x4000, scoped, tag = 'input window, operand 6, single buffered']
    #allocation11 [shape = 'u8[8192]{0}', space=vmem, size = 0x2000, scoped, tag = 'output window, operand 0']
    %13 = vsyncpa [#allocation3], 0
    %s14 = scalar_lea.sflag [#allocation3], 1
    %15 = vsyncpa %s14, 0
    %16 = vsyncpa [#allocation6], 0
    %s17 = scalar_lea.sflag [#allocation6], 1
    %18 = vsyncpa %s17, 0
    %19 = vsyncpa [#allocation9], 0
    %20 = vsyncpa [#allocation4], 0
    %s21 = scalar_lea.sflag [#allocation4], 1
    %22 = vsyncpa %s21, 0
    loop: start=0, step=1, limit=4
    $region2: #{tpu_custom_call.1} parent=1 // loop_pre_header
      _
    $region3: #{tpu_custom_call.1} parent=1 // loop_header
      %s24 = sphi 0, %s28
      %p25 = scmp.ge.s32.totalorder %s24, 4
      %s31 = sphi 0, %s43
      %s32 = sphi 0, %s39
      %s33 = sphi 0, %s31
      %s34 = sphi 0, %s32
      %s35 = sphi 0, %s33
      %s36 = sphi 0, %s34
      %s48 = sphi 0, %s50
      %s51 = sphi 0, %s48
      %s52 = sphi 0, %s51
      %s68 = sphi 0, %s52
      %s74 = sphi 0, %s76
      %s77 = sphi 0, %s74
      %s78 = sphi 0, %s77
      %s94 = sphi 0, %s78
      %s98 = sphi 0, %s98
      %s100 = sphi 0, %s98
      %s101 = sphi 0, %s100
      %s115 = sphi 0, %s101
      %s119 = sphi 0, %s119
      %s121 = sphi 0, %s119
      %s122 = sphi 0, %s121
      %s136 = sphi 0, %s122
      %s140 = sphi 0, %s140
      %s142 = sphi 0, %s140
      %s143 = sphi 0, %s142
      %s157 = sphi 0, %s143
      %s161 = sphi 0, %s161
      %s163 = sphi 0, %s161
      %s164 = sphi 0, %s163
      %s178 = sphi 0, %s164
      %s182 = sphi 0, %s182
      %s184 = sphi 0, %s182
      %s185 = sphi 0, %s184
      %s199 = sphi 0, %s185
      %s203 = sphi 0, %s203
      %s205 = sphi 0, %s203
      %s206 = sphi 0, %s205
      %s220 = sphi 0, %s206
      %s228 = sphi 0, %s230
      %s231 = sphi 0, %s228
      %s232 = sphi 0, %s231
      %s248 = sphi 0, %s232
    $region4: #{tpu_custom_call.1} parent=1 // loop_header_branch
      %27 = sbr.rel (%p25) target = $region8
    $region5: #{tpu_custom_call.1} parent=1 // loop_body
      %s29 = ssub.s32 %s24, 1
      %s30 = ssub.s32 %s24, 2
      %s37 = sadd.s32 1, %s32
      %p38 = scmp.ge.s32.totalorder %s37, 1
      %s39 = scalar_select %p38, 0, %s37
      %s40 = sadd.s32 1, %s31
      %s41 = scalar_select %p38, %s40, %s31
      %p42 = scmp.ge.s32.totalorder %s41, 2
      %s43 = scalar_select %p42, 0, %s41
      %s44 = ssub.s32 %s31, %s43
      %s45 = ssub.s32 %s32, %s39
      %s46 = sor.u32 %s44, %s45
      %p47 = scmp.eq.s32.totalorder %s46, 0
      %s49 = sadd.s32 %s48, 1
      %s50 = scalar_select %p47, %s48, %s49
      %p53 = pneg %p47
      %p54 = scmp.eq.s32.totalorder %s24, 1
      %p55 = por %p53, %p54
      %p56 = scmp.ne.s32.totalorder %s48, %s51
      %p57 = scmp.eq.s32.totalorder %s24, 0
      %p58 = por %p56, %p57
      %p59 = scmp.ne.s32.totalorder %s48, %s51
      %p60 = scmp.eq.s32.totalorder %s29, 1
      %p61 = por %p59, %p60
      %p62 = scmp.ne.s32.totalorder %s51, %s52
      %p63 = scmp.eq.s32.totalorder %s29, 0
      %p64 = por %p62, %p63
      %p65 = scmp.ne.s32.totalorder %s51, %s52
      %p66 = scmp.eq.s32.totalorder %s30, 1
      %p67 = por %p65, %p66
      %p69 = scmp.ne.s32.totalorder %s52, %s68
      %p70 = scmp.eq.s32.totalorder %s30, 0
      %p71 = por %p69, %p70
      %s72 = ssub.s32 %s31, %s43
      %p73 = scmp.eq.s32.totalorder %s72, 0
      %s75 = sadd.s32 %s74, 1
      %s76 = scalar_select %p73, %s74, %s75
      %p79 = pneg %p73
      %p80 = scmp.eq.s32.totalorder %s24, 1
      %p81 = por %p79, %p80
      %p82 = scmp.ne.s32.totalorder %s74, %s77
      %p83 = scmp.eq.s32.totalorder %s24, 0
      %p84 = por %p82, %p83
      %p85 = scmp.ne.s32.totalorder %s74, %s77
      %p86 = scmp.eq.s32.totalorder %s29, 1
      %p87 = por %p85, %p86
      %p88 = scmp.ne.s32.totalorder %s77, %s78
      %p89 = scmp.eq.s32.totalorder %s29, 0
      %p90 = por %p88, %p89
      %p91 = scmp.ne.s32.totalorder %s77, %s78
      %p92 = scmp.eq.s32.totalorder %s30, 1
      %p93 = por %p91, %p92
      %p95 = scmp.ne.s32.totalorder %s78, %s94
      %p96 = scmp.eq.s32.totalorder %s30, 0
      %p97 = por %p95, %p96
      %s99 = sadd.s32 %s98, 1
      %p102 = scmp.eq.s32.totalorder %s24, 1
      %p103 = scmp.ne.s32.totalorder %s98, %s100
      %p104 = scmp.eq.s32.totalorder %s24, 0
      %p105 = por %p103, %p104
      %p106 = scmp.ne.s32.totalorder %s98, %s100
      %p107 = scmp.eq.s32.totalorder %s29, 1
      %p108 = por %p106, %p107
      %p109 = scmp.ne.s32.totalorder %s100, %s101
      %p110 = scmp.eq.s32.totalorder %s29, 0
      %p111 = por %p109, %p110
      %p112 = scmp.ne.s32.totalorder %s100, %s101
      %p113 = scmp.eq.s32.totalorder %s30, 1
      %p114 = por %p112, %p113
      %p116 = scmp.ne.s32.totalorder %s101, %s115
      %p117 = scmp.eq.s32.totalorder %s30, 0
      %p118 = por %p116, %p117
      %s120 = sadd.s32 %s119, 1
      %p123 = scmp.eq.s32.totalorder %s24, 1
      %p124 = scmp.ne.s32.totalorder %s119, %s121
      %p125 = scmp.eq.s32.totalorder %s24, 0
      %p126 = por %p124, %p125
      %p127 = scmp.ne.s32.totalorder %s119, %s121
      %p128 = scmp.eq.s32.totalorder %s29, 1
      %p129 = por %p127, %p128
      %p130 = scmp.ne.s32.totalorder %s121, %s122
      %p131 = scmp.eq.s32.totalorder %s29, 0
      %p132 = por %p130, %p131
      %p133 = scmp.ne.s32.totalorder %s121, %s122
      %p134 = scmp.eq.s32.totalorder %s30, 1
      %p135 = por %p133, %p134
      %p137 = scmp.ne.s32.totalorder %s122, %s136
      %p138 = scmp.eq.s32.totalorder %s30, 0
      %p139 = por %p137, %p138
      %s141 = sadd.s32 %s140, 1
      %p144 = scmp.eq.s32.totalorder %s24, 1
      %p145 = scmp.ne.s32.totalorder %s140, %s142
      %p146 = scmp.eq.s32.totalorder %s24, 0
      %p147 = por %p145, %p146
      %p148 = scmp.ne.s32.totalorder %s140, %s142
      %p149 = scmp.eq.s32.totalorder %s29, 1
      %p150 = por %p148, %p149
      %p151 = scmp.ne.s32.totalorder %s142, %s143
      %p152 = scmp.eq.s32.totalorder %s29, 0
      %p153 = por %p151, %p152
      %p154 = scmp.ne.s32.totalorder %s142, %s143
      %p155 = scmp.eq.s32.totalorder %s30, 1
      %p156 = por %p154, %p155
      %p158 = scmp.ne.s32.totalorder %s143, %s157
      %p159 = scmp.eq.s32.totalorder %s30, 0
      %p160 = por %p158, %p159
      %s162 = sadd.s32 %s161, 1
      %p165 = scmp.eq.s32.totalorder %s24, 1
      %p166 = scmp.ne.s32.totalorder %s161, %s163
      %p167 = scmp.eq.s32.totalorder %s24, 0
      %p168 = por %p166, %p167
      %p169 = scmp.ne.s32.totalorder %s161, %s163
      %p170 = scmp.eq.s32.totalorder %s29, 1
      %p171 = por %p169, %p170
      %p172 = scmp.ne.s32.totalorder %s163, %s164
      %p173 = scmp.eq.s32.totalorder %s29, 0
      %p174 = por %p172, %p173
      %p175 = scmp.ne.s32.totalorder %s163, %s164
      %p176 = scmp.eq.s32.totalorder %s30, 1
      %p177 = por %p175, %p176
      %p179 = scmp.ne.s32.totalorder %s164, %s178
      %p180 = scmp.eq.s32.totalorder %s30, 0
      %p181 = por %p179, %p180
      %s183 = sadd.s32 %s182, 1
      %p186 = scmp.eq.s32.totalorder %s24, 1
      %p187 = scmp.ne.s32.totalorder %s182, %s184
      %p188 = scmp.eq.s32.totalorder %s24, 0
      %p189 = por %p187, %p188
      %p190 = scmp.ne.s32.totalorder %s182, %s184
      %p191 = scmp.eq.s32.totalorder %s29, 1
      %p192 = por %p190, %p191
      %p193 = scmp.ne.s32.totalorder %s184, %s185
      %p194 = scmp.eq.s32.totalorder %s29, 0
      %p195 = por %p193, %p194
      %p196 = scmp.ne.s32.totalorder %s184, %s185
      %p197 = scmp.eq.s32.totalorder %s30, 1
      %p198 = por %p196, %p197
      %p200 = scmp.ne.s32.totalorder %s185, %s199
      %p201 = scmp.eq.s32.totalorder %s30, 0
      %p202 = por %p200, %p201
      %s204 = sadd.s32 %s203, 1
      %p207 = scmp.eq.s32.totalorder %s24, 1
      %p208 = scmp.ne.s32.totalorder %s203, %s205
      %p209 = scmp.eq.s32.totalorder %s24, 0
      %p210 = por %p208, %p209
      %p211 = scmp.ne.s32.totalorder %s203, %s205
      %p212 = scmp.eq.s32.totalorder %s29, 1
      %p213 = por %p211, %p212
      %p214 = scmp.ne.s32.totalorder %s205, %s206
      %p215 = scmp.eq.s32.totalorder %s29, 0
      %p216 = por %p214, %p215
      %p217 = scmp.ne.s32.totalorder %s205, %s206
      %p218 = scmp.eq.s32.totalorder %s30, 1
      %p219 = por %p217, %p218
      %p221 = scmp.ne.s32.totalorder %s206, %s220
      %p222 = scmp.eq.s32.totalorder %s30, 0
      %p223 = por %p221, %p222
      %s224 = ssub.s32 %s31, %s43
      %s225 = ssub.s32 %s32, %s39
      %s226 = sor.u32 %s224, %s225
      %p227 = scmp.eq.s32.totalorder %s226, 0
      %s229 = sadd.s32 %s228, 1
      %s230 = scalar_select %p227, %s228, %s229
      %p233 = pneg %p227
      %p234 = scmp.eq.s32.totalorder %s24, 1
      %p235 = por %p233, %p234
      %p236 = scmp.ne.s32.totalorder %s228, %s231
      %p237 = scmp.eq.s32.totalorder %s24, 0
      %p238 = por %p236, %p237
      %p239 = scmp.ne.s32.totalorder %s228, %s231
      %p240 = scmp.eq.s32.totalorder %s29, 1
      %p241 = por %p239, %p240
      %p242 = scmp.ne.s32.totalorder %s231, %s232
      %p243 = scmp.eq.s32.totalorder %s29, 0
      %p244 = por %p242, %p243
      %p245 = scmp.ne.s32.totalorder %s231, %s232
      %p246 = scmp.eq.s32.totalorder %s30, 1
      %p247 = por %p245, %p246
      %p249 = scmp.ne.s32.totalorder %s232, %s248
      %p250 = scmp.eq.s32.totalorder %s30, 0
      %p251 = por %p249, %p250
      %p252 = scmp.le.s32.totalorder 1, %s24
      %p253 = scmp.lt.s32.totalorder %s24, 3
      %p254 = pnand %p252, %p253
      %p255 = pneg %p254
      // Predicated region
      $region9: #{tpu_custom_call.1} parent=5 // pred_check
        _
      $region10: #{tpu_custom_call.1} parent=5 // pred_check_branch
        %257 = sbr.rel (%p254) target = $region12
      $region11: #{tpu_custom_call.1} parent=5 // pred_region
        %s258 = ssub.s32 %s24, 1
        // Predicated region
        $region13: #{tpu_custom_call.1} parent=11 // pred_check
          %p259 = pneg %p111
        $region14: #{tpu_custom_call.1} parent=11 // pred_check_branch
          %261 = sbr.rel (%p259) target = $region16
        $region15: #{tpu_custom_call.1} parent=11 // pred_region
          %s263 = ssub.s32 512, 512
          %264 = vsyncadd [#allocation6], %s263
          %s265 = sshll.u32 [#allocation7], 4
          %s266 = int_to_ptr.vmem [resolvable:$true] %s265
          %271 = dma.hbm_to_vmem [thread:$0]  %s2, 512, %s266, [#allocation6], 128, 128, 8
        $region16: #{tpu_custom_call.1} parent=11 // pred_fallthru
          _
        // Predicated region
        $region17: #{tpu_custom_call.1} parent=11 // pred_check
          %p272 = pneg %p132
        $region18: #{tpu_custom_call.1} parent=11 // pred_check_branch
          %274 = sbr.rel (%p272) target = $region20
        $region19: #{tpu_custom_call.1} parent=11 // pred_region
          _
        $region20: #{tpu_custom_call.1} parent=11 // pred_fallthru
          _
        // Predicated region
        $region21: #{tpu_custom_call.1} parent=11 // pred_check
          %p275 = pneg %p153
        $region22: #{tpu_custom_call.1} parent=11 // pred_check_branch
          %277 = sbr.rel (%p275) target = $region24
        $region23: #{tpu_custom_call.1} parent=11 // pred_region
          %s279 = ssub.s32 512, 512
          %280 = vsyncadd [#allocation9], %s279
          %s281 = sshll.u32 [#allocation8], 4
          %s282 = int_to_ptr.vmem [resolvable:$true] %s281
          %287 = dma.hbm_to_vmem [thread:$0]  %s4, 512, %s282, [#allocation9], 128, 128, 8
        $region24: #{tpu_custom_call.1} parent=11 // pred_fallthru
          _
        // Predicated region
        $region25: #{tpu_custom_call.1} parent=11 // pred_check
          %p288 = pneg %p174
        $region26: #{tpu_custom_call.1} parent=11 // pred_check_branch
          %290 = sbr.rel (%p288) target = $region28
        $region27: #{tpu_custom_call.1} parent=11 // pred_region
          _
        $region28: #{tpu_custom_call.1} parent=11 // pred_fallthru
          _
        // Predicated region
        $region29: #{tpu_custom_call.1} parent=11 // pred_check
          %p291 = pneg %p195
        $region30: #{tpu_custom_call.1} parent=11 // pred_check_branch
          %293 = sbr.rel (%p291) target = $region32
        $region31: #{tpu_custom_call.1} parent=11 // pred_region
          %s295 = ssub.s32 512, 512
          %296 = vsyncadd [#allocation9], %s295
          %s297 = sshll.u32 [#allocation10], 4
          %s298 = int_to_ptr.vmem [resolvable:$true] %s297
          %303 = dma.hbm_to_vmem [thread:$0]  %s6, 512, %s298, [#allocation9], 128, 128, 8
        $region32: #{tpu_custom_call.1} parent=11 // pred_fallthru
          _
        // Predicated region
        $region33: #{tpu_custom_call.1} parent=11 // pred_check
          %p304 = pneg %p216
        $region34: #{tpu_custom_call.1} parent=11 // pred_check_branch
          %306 = sbr.rel (%p304) target = $region36
        $region35: #{tpu_custom_call.1} parent=11 // pred_region
          _
        $region36: #{tpu_custom_call.1} parent=11 // pred_fallthru
          _
      $region12: #{tpu_custom_call.1} parent=5 // pred_fallthru
        _
      %p307 = scmp.lt.s32.totalorder %s24, 2
      // Predicated region
      $region37: #{tpu_custom_call.1} parent=5 // pred_check
        %p308 = pneg %p307
      $region38: #{tpu_custom_call.1} parent=5 // pred_check_branch
        %310 = sbr.rel (%p308) target = $region40
      $region39: #{tpu_custom_call.1} parent=5 // pred_region
        // Predicated region
        $region41: #{tpu_custom_call.1} parent=39 // pred_check
          %p311 = pneg %p58
        $region42: #{tpu_custom_call.1} parent=39 // pred_check_branch
          %313 = sbr.rel (%p311) target = $region44
        $region43: #{tpu_custom_call.1} parent=39 // pred_region
          %s314 = sand.u32 %s48, 1
          %s315 = scalar_lea.sflag [#allocation3], %s314
          %s316 = sand.u32 %s48, 1
          %s317 = smul.addr %s316, 8
          %s318 = scalar_lea.vmem [#allocation2], %s317
          %s320 = ssub.s32 128, 128
          %321 = vsyncadd %s315, %s320
          %s322 = sadd.s32 %s32, %s31
          %s323 = smul.addr %s322, 128
          %s324 = scalar_lea.hbm %s0, %s323
          %s326 = sshll.u32 %s318, 4
          %s327 = int_to_ptr.vmem [resolvable:$true] %s326
          %329 = dma.hbm_to_vmem [thread:$0]  %s324, 128, %s327, %s315
        $region44: #{tpu_custom_call.1} parent=39 // pred_fallthru
          _
        // Predicated region
        $region45: #{tpu_custom_call.1} parent=39 // pred_check
          %p330 = pneg %p84
        $region46: #{tpu_custom_call.1} parent=39 // pred_check_branch
          %332 = sbr.rel (%p330) target = $region48
        $region47: #{tpu_custom_call.1} parent=39 // pred_region
          %s333 = sand.u32 %s24, 1
          %s334 = scalar_lea.sflag [#allocation6], %s333
          %s335 = sand.u32 %s74, 1
          %s336 = smul.addr %s335, 16
          %s337 = scalar_lea.vmem [#allocation5], %s336
          %s339 = ssub.s32 256, 256
          %340 = vsyncadd %s334, %s339
          %s341 = smul.addr %s31, 2
          %s342 = smul.addr %s341, 128
          %s343 = scalar_lea.hbm %s1, %s342
          %s344 = sshll.u32 %s337, 4
          %s345 = int_to_ptr.vmem [resolvable:$true] %s344
          %350 = dma.hbm_to_vmem [thread:$0]  %s343, 256, %s345, %s334, 128, 128, 8
        $region48: #{tpu_custom_call.1} parent=39 // pred_fallthru
          _
      $region40: #{tpu_custom_call.1} parent=5 // pred_fallthru
        _
      %p351 = scmp.le.s32.totalorder 1, %s24
      %p352 = scmp.lt.s32.totalorder %s24, 3
      %p353 = pnand %p351, %p352
      %p354 = pneg %p353
      // Predicated region
      $region49: #{tpu_custom_call.1} parent=5 // pred_check
        _
      $region50: #{tpu_custom_call.1} parent=5 // pred_check_branch
        %356 = sbr.rel (%p353) target = $region52
      $region51: #{tpu_custom_call.1} parent=5 // pred_region
        %s357 = ssub.s32 %s24, 1
        %s358 = sand.u32 %s51, 1
        %s359 = scalar_lea.sflag [#allocation3], %s358
        %s360 = sand.u32 %s51, 1
        %s361 = smul.addr %s360, 8
        %s362 = scalar_lea.vmem [#allocation2], %s361
        // Predicated region
        $region53: #{tpu_custom_call.1} parent=51 // pred_check
          %p363 = pneg %p64
        $region54: #{tpu_custom_call.1} parent=51 // pred_check_branch
          %365 = sbr.rel (%p363) target = $region56
        $region55: #{tpu_custom_call.1} parent=51 // pred_region
          %366 = dma.done %s359, 128
        $region56: #{tpu_custom_call.1} parent=51 // pred_fallthru
          _
        %s367 = sand.u32 %s29, 1
        %s368 = scalar_lea.sflag [#allocation6], %s367
        %s369 = sand.u32 %s77, 1
        %s370 = smul.addr %s369, 16
        %s371 = scalar_lea.vmem [#allocation5], %s370
        // Predicated region
        $region57: #{tpu_custom_call.1} parent=51 // pred_check
          %p372 = pneg %p90
        $region58: #{tpu_custom_call.1} parent=51 // pred_check_branch
          %374 = sbr.rel (%p372) target = $region60
        $region59: #{tpu_custom_call.1} parent=51 // pred_region
          %375 = dma.done %s368, 256
        $region60: #{tpu_custom_call.1} parent=51 // pred_fallthru
          _
        // Predicated region
        $region61: #{tpu_custom_call.1} parent=51 // pred_check
          %p376 = pneg %p111
        $region62: #{tpu_custom_call.1} parent=51 // pred_check_branch
          %378 = sbr.rel (%p376) target = $region64
        $region63: #{tpu_custom_call.1} parent=51 // pred_region
          %379 = dma.done [#allocation6], 512
        $region64: #{tpu_custom_call.1} parent=51 // pred_fallthru
          _
        // Predicated region
        $region65: #{tpu_custom_call.1} parent=51 // pred_check
          %p380 = pneg %p153
        $region66: #{tpu_custom_call.1} parent=51 // pred_check_branch
          %382 = sbr.rel (%p380) target = $region68
        $region67: #{tpu_custom_call.1} parent=51 // pred_region
          %383 = dma.done [#allocation9], 512
        $region68: #{tpu_custom_call.1} parent=51 // pred_fallthru
          _
        // Predicated region
        $region69: #{tpu_custom_call.1} parent=51 // pred_check
          %p384 = pneg %p195
        $region70: #{tpu_custom_call.1} parent=51 // pred_check_branch
          %386 = sbr.rel (%p384) target = $region72
        $region71: #{tpu_custom_call.1} parent=51 // pred_region
          %387 = dma.done [#allocation9], 512
        $region72: #{tpu_custom_call.1} parent=51 // pred_fallthru
          _
        %s388 = sand.u32 %s51, 1
        %s389 = scalar_lea.sflag [#allocation3], %s388
        %s390 = sand.u32 %s51, 1
        %s391 = smul.addr %s390, 8
        %s392 = scalar_lea.vmem [#allocation2], %s391
        %p393 = pneg %p64
        %p394 = pneg %p61
        %s395 = sand.u32 %s29, 1
        %s396 = scalar_lea.sflag [#allocation6], %s395
        %s397 = sand.u32 %s77, 1
        %s398 = smul.addr %s397, 16
        %s399 = scalar_lea.vmem [#allocation5], %s398
        %p400 = pneg %p90
        %p401 = pneg %p87
        %p402 = pneg %p111
        %p403 = pneg %p108
        %p404 = pneg %p132
        %p405 = pneg %p129
        %p406 = pneg %p153
        %p407 = pneg %p150
        %p408 = pneg %p174
        %p409 = pneg %p171
        %p410 = pneg %p195
        %p411 = pneg %p192
        %p412 = pneg %p216
        %p413 = pneg %p213
        %p414 = pneg %p244
        %p415 = pneg %p241
        %s416 = sand.u32 %s231, 1
        %s417 = scalar_lea.sflag [#allocation4], %s416
        %s418 = sand.u32 %s231, 1
        %s419 = smul.addr %s418, 8
        %s420 = scalar_lea.vmem [#allocation11], %s419
        %v421 = vld [vmem:[%s362] sm:$0xff]
        %v422 = vld [vmem:[%s371] sm:$0xff]
        %v423 = vld [vmem:[%s371 + $0x8] sm:$0xff]
        %v424 = vld [vmem:[#allocation7] sm:$0xff]
        %v425 = vld [vmem:[#allocation7 + $0x8] sm:$0xff]
        %v426 = vld [vmem:[#allocation7 + $0x10] sm:$0xff]
        %v427 = vld [vmem:[#allocation7 + $0x18] sm:$0xff]
        %v428 = vld [vmem:[%s3] sm:$0x1]
        %v430 = vlaneseq
        %v431 = vshrl.u32 %v430, 7
        %v432 = vsub.s32 0, %v431
        %v433 = vrot.slane %v428, %v432
        %vm435 = vcmask 261120
        %v437 = vsel %vm435, %v421, 0
        %439 = vmatprep.subr.mxu0 0.0
        %440 = vmatpush1.msra.mxu0 0.0
        %441 = vmatprep.subr.mxu0 0.0
        %442 = vmatpush1.msra.mxu0 0.0
        %443 = vmatprep.subr.mxu0 0.0
        %444 = vmatpush1.msra.mxu0 0.0
        %445 = vmatprep.subr.mxu0 0.0
        %446 = vmatpush1.msra.mxu0 0.0
        %447 = vmatprep.subr.mxu0 0.0
        %448 = vmatpush1.msra.mxu0 0.0
        %449 = vmatprep.subr.mxu0 0.0
        %450 = vmatpush1.msra.mxu0 0.0
        %451 = vmatprep.subr.mxu0 0.0
        %452 = vmatpush1.msra.mxu0 0.0
        %453 = vmatprep.subr.mxu0 0.0
        %454 = vmatpush1.msra.mxu0 0.0
        %455 = vmatprep.subr.mxu0 0.0
        %456 = vmatpush1.msra.mxu0 0.0
        %457 = vmatprep.subr.mxu0 0.0
        %458 = vmatpush1.msra.mxu0 0.0
        %459 = vmatprep.subr.mxu0 0.0
        %460 = vmatpush1.msra.mxu0 0.0
        %461 = vmatprep.subr.mxu0 0.0
        %462 = vmatpush1.msra.mxu0 0.0
        %463 = vmatprep.subr.mxu0 0.0
        %464 = vmatpush1.msra.mxu0 %v427
        %465 = vmatprep.subr.mxu0 0.0
        %466 = vmatpush1.msra.mxu0 %v426
        %467 = vmatprep.subr.mxu0 0.0
        %468 = vmatpush1.msra.mxu0 %v425
        %469 = vmatprep.subr.mxu0 0.0
        %470 = vmatpush1.msra.mxu0 %v424
        %471 = vmatprep.subr.mxu0 0.0
        %472 = vmatpush2.msra.mxu0 0.0
        %473 = vmatprep.subr.mxu0 0.0
        %474 = vmatpush2.msra.mxu0 0.0
        %475 = vmatprep.subr.mxu0 0.0
        %476 = vmatpush2.msra.mxu0 0.0
        %477 = vmatprep.subr.mxu0 0.0
        %478 = vmatpush2.msra.mxu0 0.0
        %479 = vmatprep.subr.mxu0 0.0
        %480 = vmatpush2.msra.mxu0 0.0
        %481 = vmatprep.subr.mxu0 0.0
        %482 = vmatpush2.msra.mxu0 0.0
        %483 = vmatprep.subr.mxu0 0.0
        %484 = vmatpush2.msra.mxu0 0.0
        %485 = vmatprep.subr.mxu0 0.0
        %486 = vmatpush2.msra.mxu0 0.0
        %487 = vmatprep.subr.mxu0 0.0
        %488 = vmatpush2.msra.mxu0 0.0
        %489 = vmatprep.subr.mxu0 0.0
        %490 = vmatpush2.msra.mxu0 0.0
        %491 = vmatprep.subr.mxu0 0.0
        %492 = vmatpush2.msra.mxu0 0.0
        %493 = vmatprep.subr.mxu0 0.0
        %494 = vmatpush2.msra.mxu0 0.0
        %495 = vmatprep.subr.mxu0 0.0
        %496 = vmatpush2.msra.mxu0 0.0
        %497 = vmatprep.subr.mxu0 0.0
        %498 = vmatpush2.msra.mxu0 0.0
        %499 = vmatprep.subr.mxu0 0.0
        %500 = vmatpush2.msra.mxu0 0.0
        %501 = vmatprep.subr.mxu0 0.0
        %502 = vmatpush2.msra.mxu0 0.0
        %503 = vmatprep.mubr.f32.mxu0 0.0
        %504 = vmatmul.mubr.f32.gmra.mxu0 %v437
        %v505 = vpop.f32.mrf.mxu0
        %v506 = vadd.f32 %v433, %v505
        %v507 = vpop.f32.mrf.mxu0
        %508 = vdwg.mxu0
        %v509 = vld [vmem:[#allocation8] sm:$0xff]
        %v510 = vld [vmem:[#allocation8 + $0x8] sm:$0xff]
        %v511 = vld [vmem:[#allocation8 + $0x10] sm:$0xff]
        %v512 = vld [vmem:[#allocation8 + $0x18] sm:$0xff]
        %v513 = vld [vmem:[%s5] sm:$0x1]
        %v515 = vlaneseq
        %v516 = vshrl.u32 %v515, 7
        %v517 = vsub.s32 0, %v516
        %v518 = vrot.slane %v513, %v517
        %v521 = vsel %vm435, %v422, 0
        %v524 = vsel %vm435, %v423, 0
        %526 = vmatprep.subr.mxu0 0.0
        %527 = vmatpush1.msra.mxu0 0.0
        %528 = vmatprep.subr.mxu0 0.0
        %529 = vmatpush1.msra.mxu0 0.0
        %530 = vmatprep.subr.mxu0 0.0
        %531 = vmatpush1.msra.mxu0 0.0
        %532 = vmatprep.subr.mxu0 0.0
        %533 = vmatpush1.msra.mxu0 0.0
        %534 = vmatprep.subr.mxu0 0.0
        %535 = vmatpush1.msra.mxu0 0.0
        %536 = vmatprep.subr.mxu0 0.0
        %537 = vmatpush1.msra.mxu0 0.0
        %538 = vmatprep.subr.mxu0 0.0
        %539 = vmatpush1.msra.mxu0 0.0
        %540 = vmatprep.subr.mxu0 0.0
        %541 = vmatpush1.msra.mxu0 0.0
        %542 = vmatprep.subr.mxu0 0.0
        %543 = vmatpush1.msra.mxu0 0.0
        %544 = vmatprep.subr.mxu0 0.0
        %545 = vmatpush1.msra.mxu0 0.0
        %546 = vmatprep.subr.mxu0 0.0
        %547 = vmatpush1.msra.mxu0 0.0
        %548 = vmatprep.subr.mxu0 0.0
        %549 = vmatpush1.msra.mxu0 0.0
        %550 = vmatprep.subr.mxu0 0.0
        %551 = vmatpush1.msra.mxu0 %v512
        %552 = vmatprep.subr.mxu0 0.0
        %553 = vmatpush1.msra.mxu0 %v511
        %554 = vmatprep.subr.mxu0 0.0
        %555 = vmatpush1.msra.mxu0 %v510
        %556 = vmatprep.subr.mxu0 0.0
        %557 = vmatpush1.msra.mxu0 %v509
        %558 = vmatprep.subr.mxu0 0.0
        %559 = vmatpush2.msra.mxu0 0.0
        %560 = vmatprep.subr.mxu0 0.0
        %561 = vmatpush2.msra.mxu0 0.0
        %562 = vmatprep.subr.mxu0 0.0
        %563 = vmatpush2.msra.mxu0 0.0
        %564 = vmatprep.subr.mxu0 0.0
        %565 = vmatpush2.msra.mxu0 0.0
        %566 = vmatprep.subr.mxu0 0.0
        %567 = vmatpush2.msra.mxu0 0.0
        %568 = vmatprep.subr.mxu0 0.0
        %569 = vmatpush2.msra.mxu0 0.0
        %570 = vmatprep.subr.mxu0 0.0
        %571 = vmatpush2.msra.mxu0 0.0
        %572 = vmatprep.subr.mxu0 0.0
        %573 = vmatpush2.msra.mxu0 0.0
        %574 = vmatprep.subr.mxu0 0.0
        %575 = vmatpush2.msra.mxu0 0.0
        %576 = vmatprep.subr.mxu0 0.0
        %577 = vmatpush2.msra.mxu0 0.0
        %578 = vmatprep.subr.mxu0 0.0
        %579 = vmatpush2.msra.mxu0 0.0
        %580 = vmatprep.subr.mxu0 0.0
        %581 = vmatpush2.msra.mxu0 0.0
        %582 = vmatprep.subr.mxu0 0.0
        %583 = vmatpush2.msra.mxu0 0.0
        %584 = vmatprep.subr.mxu0 0.0
        %585 = vmatpush2.msra.mxu0 0.0
        %586 = vmatprep.subr.mxu0 0.0
        %587 = vmatpush2.msra.mxu0 0.0
        %588 = vmatprep.subr.mxu0 0.0
        %589 = vmatpush2.msra.mxu0 0.0
        %590 = vmatprep.mubr.f32.mxu0 0.0
        %591 = vmatmul.mubr.f32.gmra.mxu0 %v521
        %v592 = vpop.f32.mrf.mxu0
        %v593 = vadd.f32 %v518, %v592
        %v594 = vpop.f32.mrf.mxu0
        %595 = vmatprep.mubr.f32.mxu0 0.0
        %596 = vmatmul.mubr.f32.gmra.mxu0 %v524
        %v597 = vpop.f32.mrf.mxu0
        %v598 = vadd.f32 %v518, %v597
        %v599 = vpop.f32.mrf.mxu0
        %600 = vdwg.mxu0
        %vm601 = vcmask 64512
        %v603 = vsel %vm601, %v506, 0
        %v606 = vsel %vm601, %v593, 0
        %v609 = vsel %vm601, %v598, 0
        %611 = vmatprep.subr.mxu0 0.0
        %612 = vmatpush1.xpose.msra.mxu0 0.0
        %613 = vmatprep.subr.mxu0 0.0
        %614 = vmatpush1.xpose.msra.mxu0 0.0
        %615 = vmatprep.subr.mxu0 0.0
        %616 = vmatpush1.xpose.msra.mxu0 0.0
        %617 = vmatprep.subr.mxu0 0.0
        %618 = vmatpush1.xpose.msra.mxu0 0.0
        %619 = vmatprep.subr.mxu0 0.0
        %620 = vmatpush1.xpose.msra.mxu0 0.0
        %621 = vmatprep.subr.mxu0 0.0
        %622 = vmatpush1.xpose.msra.mxu0 0.0
        %623 = vmatprep.subr.mxu0 0.0
        %624 = vmatpush1.xpose.msra.mxu0 0.0
        %625 = vmatprep.subr.mxu0 0.0
        %626 = vmatpush1.xpose.msra.mxu0 0.0
        %627 = vmatprep.subr.mxu0 0.0
        %628 = vmatpush1.xpose.msra.mxu0 0.0
        %629 = vmatprep.subr.mxu0 0.0
        %630 = vmatpush1.xpose.msra.mxu0 0.0
        %631 = vmatprep.subr.mxu0 0.0
        %632 = vmatpush1.xpose.msra.mxu0 0.0
        %633 = vmatprep.subr.mxu0 0.0
        %634 = vmatpush1.xpose.msra.mxu0 0.0
        %635 = vmatprep.subr.mxu0 0.0
        %636 = vmatpush1.xpose.msra.mxu0 0.0
        %637 = vmatprep.subr.mxu0 0.0
        %638 = vmatpush1.xpose.msra.mxu0 0.0
        %639 = vmatprep.subr.mxu0 0.0
        %640 = vmatpush1.xpose.msra.mxu0 %v609
        %641 = vmatprep.subr.mxu0 0.0
        %642 = vmatpush1.xpose.msra.mxu0 %v606
        %643 = vmatprep.subr.mxu0 0.0
        %644 = vmatpush2.xpose.msra.mxu0 0.0
        %645 = vmatprep.subr.mxu0 0.0
        %646 = vmatpush2.xpose.msra.mxu0 0.0
        %647 = vmatprep.subr.mxu0 0.0
        %648 = vmatpush2.xpose.msra.mxu0 0.0
        %649 = vmatprep.subr.mxu0 0.0
        %650 = vmatpush2.xpose.msra.mxu0 0.0
        %651 = vmatprep.subr.mxu0 0.0
        %652 = vmatpush2.xpose.msra.mxu0 0.0
        %653 = vmatprep.subr.mxu0 0.0
        %654 = vmatpush2.xpose.msra.mxu0 0.0
        %655 = vmatprep.subr.mxu0 0.0
        %656 = vmatpush2.xpose.msra.mxu0 0.0
        %657 = vmatprep.subr.mxu0 0.0
        %658 = vmatpush2.xpose.msra.mxu0 0.0
        %659 = vmatprep.subr.mxu0 0.0
        %660 = vmatpush2.xpose.msra.mxu0 0.0
        %661 = vmatprep.subr.mxu0 0.0
        %662 = vmatpush2.xpose.msra.mxu0 0.0
        %663 = vmatprep.subr.mxu0 0.0
        %664 = vmatpush2.xpose.msra.mxu0 0.0
        %665 = vmatprep.subr.mxu0 0.0
        %666 = vmatpush2.xpose.msra.mxu0 0.0
        %667 = vmatprep.subr.mxu0 0.0
        %668 = vmatpush2.xpose.msra.mxu0 0.0
        %669 = vmatprep.subr.mxu0 0.0
        %670 = vmatpush2.xpose.msra.mxu0 0.0
        %671 = vmatprep.subr.mxu0 0.0
        %672 = vmatpush2.xpose.msra.mxu0 0.0
        %673 = vmatprep.subr.mxu0 0.0
        %674 = vmatpush2.xpose.msra.mxu0 0.0
        %675 = vmatprep.mubr.f32.mxu0 0.0
        %676 = vmatmul.mubr.f32.gmra.mxu0 %v603
        %v677 = vpop.f32.mrf.mxu0
        %v678 = vadd.f32 0.0, %v677
        %v679 = vpop.f32.mrf.mxu0
        %680 = vdwg.mxu0
        %v681 = vmul.f32 %v678, 0.35355338
        %vm682 = vcmask 130048
        %v683 = vsel %vm682, %v681, -inf
        %684 = vmax.xlane.f32.xlu0 %v683
        %v685 = vpop.xlane.xlu0 %684
        %v686 = vsub.f32 %v681, %v685
        %v687 = vmul.f32 %v686, 1.442695
        %v688 = vpow.pop %v687
        %v689 = vsel %vm682, %v688, 0.0
        %690 = vadd.xlane.f32.xlu0 %v689
        %v691 = vpop.xlane.xlu0 %690
        %692 = vrot.lane.b32.xlu0 %v593, 96
        %v693 = vpop.permute.xlu0 %692
        %694 = vrot.lane.b32.xlu0 %v598, 96
        %v695 = vpop.permute.xlu0 %694
        %v699 = vsel %vm682, %v688, 0
        %701 = vmatprep.subr.mxu0 0.0
        %702 = vmatpush1.msra.mxu0 0.0
        %703 = vmatprep.subr.mxu0 0.0
        %704 = vmatpush1.msra.mxu0 0.0
        %705 = vmatprep.subr.mxu0 0.0
        %706 = vmatpush1.msra.mxu0 0.0
        %707 = vmatprep.subr.mxu0 0.0
        %708 = vmatpush1.msra.mxu0 0.0
        %709 = vmatprep.subr.mxu0 0.0
        %710 = vmatpush1.msra.mxu0 0.0
        %711 = vmatprep.subr.mxu0 0.0
        %712 = vmatpush1.msra.mxu0 0.0
        %713 = vmatprep.subr.mxu0 0.0
        %714 = vmatpush1.msra.mxu0 0.0
        %715 = vmatprep.subr.mxu0 0.0
        %716 = vmatpush1.msra.mxu0 0.0
        %717 = vmatprep.subr.mxu0 0.0
        %718 = vmatpush1.msra.mxu0 0.0
        %719 = vmatprep.subr.mxu0 0.0
        %720 = vmatpush1.msra.mxu0 0.0
        %721 = vmatprep.subr.mxu0 0.0
        %722 = vmatpush1.msra.mxu0 0.0
        %723 = vmatprep.subr.mxu0 0.0
        %724 = vmatpush1.msra.mxu0 0.0
        %725 = vmatprep.subr.mxu0 0.0
        %726 = vmatpush1.msra.mxu0 0.0
        %727 = vmatprep.subr.mxu0 0.0
        %728 = vmatpush1.msra.mxu0 0.0
        %729 = vmatprep.subr.mxu0 0.0
        %730 = vmatpush1.msra.mxu0 %v695
        %731 = vmatprep.subr.mxu0 0.0
        %732 = vmatpush1.msra.mxu0 %v693
        %733 = vmatprep.subr.mxu0 0.0
        %734 = vmatpush2.msra.mxu0 0.0
        %735 = vmatprep.subr.mxu0 0.0
        %736 = vmatpush2.msra.mxu0 0.0
        %737 = vmatprep.subr.mxu0 0.0
        %738 = vmatpush2.msra.mxu0 0.0
        %739 = vmatprep.subr.mxu0 0.0
        %740 = vmatpush2.msra.mxu0 0.0
        %741 = vmatprep.subr.mxu0 0.0
        %742 = vmatpush2.msra.mxu0 0.0
        %743 = vmatprep.subr.mxu0 0.0
        %744 = vmatpush2.msra.mxu0 0.0
        %745 = vmatprep.subr.mxu0 0.0
        %746 = vmatpush2.msra.mxu0 0.0
        %747 = vmatprep.subr.mxu0 0.0
        %748 = vmatpush2.msra.mxu0 0.0
        %749 = vmatprep.subr.mxu0 0.0
        %750 = vmatpush2.msra.mxu0 0.0
        %751 = vmatprep.subr.mxu0 0.0
        %752 = vmatpush2.msra.mxu0 0.0
        %753 = vmatprep.subr.mxu0 0.0
        %754 = vmatpush2.msra.mxu0 0.0
        %755 = vmatprep.subr.mxu0 0.0
        %756 = vmatpush2.msra.mxu0 0.0
        %757 = vmatprep.subr.mxu0 0.0
        %758 = vmatpush2.msra.mxu0 0.0
        %759 = vmatprep.subr.mxu0 0.0
        %760 = vmatpush2.msra.mxu0 0.0
        %761 = vmatprep.subr.mxu0 0.0
        %762 = vmatpush2.msra.mxu0 0.0
        %763 = vmatprep.subr.mxu0 0.0
        %764 = vmatpush2.msra.mxu0 0.0
        %765 = vmatprep.mubr.f32.mxu0 0.0
        %766 = vmatmul.mubr.f32.gmra.mxu0 %v699
        %v767 = vpop.f32.mrf.mxu0
        %v768 = vadd.f32 0.0, %v767
        %v769 = vpop.f32.mrf.mxu0
        %770 = vdwg.mxu0
        %v771 = vrcp.pop %v691
        %v772 = vmul.f32 %v768, %v771
        %773 = vrot.lane.b32.xlu0 %v506, 120
        %v774 = vpop.permute.xlu0 %773
        %775 = vrot.lane.b32.xlu0 %v593, 120
        %v776 = vpop.permute.xlu0 %775
        %777 = vrot.lane.b32.xlu0 %v598, 120
        %v778 = vpop.permute.xlu0 %777
        %v779 = vsel %vm601, %v774, 0
        %v781 = vsel %vm601, %v776, 0
        %v783 = vsel %vm601, %v778, 0
        %785 = vmatprep.subr.mxu0 0.0
        %786 = vmatpush1.xpose.msra.mxu0 0.0
        %787 = vmatprep.subr.mxu0 0.0
        %788 = vmatpush1.xpose.msra.mxu0 0.0
        %789 = vmatprep.subr.mxu0 0.0
        %790 = vmatpush1.xpose.msra.mxu0 0.0
        %791 = vmatprep.subr.mxu0 0.0
        %792 = vmatpush1.xpose.msra.mxu0 0.0
        %793 = vmatprep.subr.mxu0 0.0
        %794 = vmatpush1.xpose.msra.mxu0 0.0
        %795 = vmatprep.subr.mxu0 0.0
        %796 = vmatpush1.xpose.msra.mxu0 0.0
        %797 = vmatprep.subr.mxu0 0.0
        %798 = vmatpush1.xpose.msra.mxu0 0.0
        %799 = vmatprep.subr.mxu0 0.0
        %800 = vmatpush1.xpose.msra.mxu0 0.0
        %801 = vmatprep.subr.mxu0 0.0
        %802 = vmatpush1.xpose.msra.mxu0 0.0
        %803 = vmatprep.subr.mxu0 0.0
        %804 = vmatpush1.xpose.msra.mxu0 0.0
        %805 = vmatprep.subr.mxu0 0.0
        %806 = vmatpush1.xpose.msra.mxu0 0.0
        %807 = vmatprep.subr.mxu0 0.0
        %808 = vmatpush1.xpose.msra.mxu0 0.0
        %809 = vmatprep.subr.mxu0 0.0
        %810 = vmatpush1.xpose.msra.mxu0 0.0
        %811 = vmatprep.subr.mxu0 0.0
        %812 = vmatpush1.xpose.msra.mxu0 0.0
        %813 = vmatprep.subr.mxu0 0.0
        %814 = vmatpush1.xpose.msra.mxu0 %v783
        %815 = vmatprep.subr.mxu0 0.0
        %816 = vmatpush1.xpose.msra.mxu0 %v781
        %817 = vmatprep.subr.mxu0 0.0
        %818 = vmatpush2.xpose.msra.mxu0 0.0
        %819 = vmatprep.subr.mxu0 0.0
        %820 = vmatpush2.xpose.msra.mxu0 0.0
        %821 = vmatprep.subr.mxu0 0.0
        %822 = vmatpush2.xpose.msra.mxu0 0.0
        %823 = vmatprep.subr.mxu0 0.0
        %824 = vmatpush2.xpose.msra.mxu0 0.0
        %825 = vmatprep.subr.mxu0 0.0
        %826 = vmatpush2.xpose.msra.mxu0 0.0
        %827 = vmatprep.subr.mxu0 0.0
        %828 = vmatpush2.xpose.msra.mxu0 0.0
        %829 = vmatprep.subr.mxu0 0.0
        %830 = vmatpush2.xpose.msra.mxu0 0.0
        %831 = vmatprep.subr.mxu0 0.0
        %832 = vmatpush2.xpose.msra.mxu0 0.0
        %833 = vmatprep.subr.mxu0 0.0
        %834 = vmatpush2.xpose.msra.mxu0 0.0
        %835 = vmatprep.subr.mxu0 0.0
        %836 = vmatpush2.xpose.msra.mxu0 0.0
        %837 = vmatprep.subr.mxu0 0.0
        %838 = vmatpush2.xpose.msra.mxu0 0.0
        %839 = vmatprep.subr.mxu0 0.0
        %840 = vmatpush2.xpose.msra.mxu0 0.0
        %841 = vmatprep.subr.mxu0 0.0
        %842 = vmatpush2.xpose.msra.mxu0 0.0
        %843 = vmatprep.subr.mxu0 0.0
        %844 = vmatpush2.xpose.msra.mxu0 0.0
        %845 = vmatprep.subr.mxu0 0.0
        %846 = vmatpush2.xpose.msra.mxu0 0.0
        %847 = vmatprep.subr.mxu0 0.0
        %848 = vmatpush2.xpose.msra.mxu0 0.0
        %849 = vmatprep.mubr.f32.mxu0 0.0
        %850 = vmatmul.mubr.f32.gmra.mxu0 %v779
        %v851 = vpop.f32.mrf.mxu0
        %v852 = vadd.f32 0.0, %v851
        %v853 = vpop.f32.mrf.mxu0
        %854 = vdwg.mxu0
        %v855 = vmul.f32 %v852, 0.35355338
        %v856 = vsel %vm682, %v855, -inf
        %857 = vmax.xlane.f32.xlu0 %v856
        %v858 = vpop.xlane.xlu0 %857
        %v859 = vsub.f32 %v855, %v858
        %v860 = vmul.f32 %v859, 1.442695
        %v861 = vpow.pop %v860
        %v862 = vsel %vm682, %v861, 0.0
        %863 = vadd.xlane.f32.xlu0 %v862
        %v864 = vpop.xlane.xlu0 %863
        %865 = vrot.lane.b32.xlu0 %v593, 88
        %v866 = vpop.permute.xlu0 %865
        %867 = vrot.lane.b32.xlu0 %v598, 88
        %v868 = vpop.permute.xlu0 %867
        %v872 = vsel %vm682, %v861, 0
        %874 = vmatprep.subr.mxu0 0.0
        %875 = vmatpush1.msra.mxu0 0.0
        %876 = vmatprep.subr.mxu0 0.0
        %877 = vmatpush1.msra.mxu0 0.0
        %878 = vmatprep.subr.mxu0 0.0
        %879 = vmatpush1.msra.mxu0 0.0
        %880 = vmatprep.subr.mxu0 0.0
        %881 = vmatpush1.msra.mxu0 0.0
        %882 = vmatprep.subr.mxu0 0.0
        %883 = vmatpush1.msra.mxu0 0.0
        %884 = vmatprep.subr.mxu0 0.0
        %885 = vmatpush1.msra.mxu0 0.0
        %886 = vmatprep.subr.mxu0 0.0
        %887 = vmatpush1.msra.mxu0 0.0
        %888 = vmatprep.subr.mxu0 0.0
        %889 = vmatpush1.msra.mxu0 0.0
        %890 = vmatprep.subr.mxu0 0.0
        %891 = vmatpush1.msra.mxu0 0.0
        %892 = vmatprep.subr.mxu0 0.0
        %893 = vmatpush1.msra.mxu0 0.0
        %894 = vmatprep.subr.mxu0 0.0
        %895 = vmatpush1.msra.mxu0 0.0
        %896 = vmatprep.subr.mxu0 0.0
        %897 = vmatpush1.msra.mxu0 0.0
        %898 = vmatprep.subr.mxu0 0.0
        %899 = vmatpush1.msra.mxu0 0.0
        %900 = vmatprep.subr.mxu0 0.0
        %901 = vmatpush1.msra.mxu0 0.0
        %902 = vmatprep.subr.mxu0 0.0
        %903 = vmatpush1.msra.mxu0 %v868
        %904 = vmatprep.subr.mxu0 0.0
        %905 = vmatpush1.msra.mxu0 %v866
        %906 = vmatprep.subr.mxu0 0.0
        %907 = vmatpush2.msra.mxu0 0.0
        %908 = vmatprep.subr.mxu0 0.0
        %909 = vmatpush2.msra.mxu0 0.0
        %910 = vmatprep.subr.mxu0 0.0
        %911 = vmatpush2.msra.mxu0 0.0
        %912 = vmatprep.subr.mxu0 0.0
        %913 = vmatpush2.msra.mxu0 0.0
        %914 = vmatprep.subr.mxu0 0.0
        %915 = vmatpush2.msra.mxu0 0.0
        %916 = vmatprep.subr.mxu0 0.0
        %917 = vmatpush2.msra.mxu0 0.0
        %918 = vmatprep.subr.mxu0 0.0
        %919 = vmatpush2.msra.mxu0 0.0
        %920 = vmatprep.subr.mxu0 0.0
        %921 = vmatpush2.msra.mxu0 0.0
        %922 = vmatprep.subr.mxu0 0.0
        %923 = vmatpush2.msra.mxu0 0.0
        %924 = vmatprep.subr.mxu0 0.0
        %925 = vmatpush2.msra.mxu0 0.0
        %926 = vmatprep.subr.mxu0 0.0
        %927 = vmatpush2.msra.mxu0 0.0
        %928 = vmatprep.subr.mxu0 0.0
        %929 = vmatpush2.msra.mxu0 0.0
        %930 = vmatprep.subr.mxu0 0.0
        %931 = vmatpush2.msra.mxu0 0.0
        %932 = vmatprep.subr.mxu0 0.0
        %933 = vmatpush2.msra.mxu0 0.0
        %934 = vmatprep.subr.mxu0 0.0
        %935 = vmatpush2.msra.mxu0 0.0
        %936 = vmatprep.subr.mxu0 0.0
        %937 = vmatpush2.msra.mxu0 0.0
        %938 = vmatprep.mubr.f32.mxu0 0.0
        %939 = vmatmul.mubr.f32.gmra.mxu0 %v872
        %v940 = vpop.f32.mrf.mxu0
        %v941 = vadd.f32 0.0, %v940
        %v942 = vpop.f32.mrf.mxu0
        %943 = vdwg.mxu0
        %v944 = vrcp.pop %v864
        %v945 = vmul.f32 %v941, %v944
        %946 = vrot.lane.b32.xlu0 %v506, 112
        %v947 = vpop.permute.xlu0 %946
        %948 = vrot.lane.b32.xlu0 %v593, 112
        %v949 = vpop.permute.xlu0 %948
        %950 = vrot.lane.b32.xlu0 %v598, 112
        %v951 = vpop.permute.xlu0 %950
        %v952 = vsel %vm601, %v947, 0
        %v954 = vsel %vm601, %v949, 0
        %v956 = vsel %vm601, %v951, 0
        %958 = vmatprep.subr.mxu0 0.0
        %959 = vmatpush1.xpose.msra.mxu0 0.0
        %960 = vmatprep.subr.mxu0 0.0
        %961 = vmatpush1.xpose.msra.mxu0 0.0
        %962 = vmatprep.subr.mxu0 0.0
        %963 = vmatpush1.xpose.msra.mxu0 0.0
        %964 = vmatprep.subr.mxu0 0.0
        %965 = vmatpush1.xpose.msra.mxu0 0.0
        %966 = vmatprep.subr.mxu0 0.0
        %967 = vmatpush1.xpose.msra.mxu0 0.0
        %968 = vmatprep.subr.mxu0 0.0
        %969 = vmatpush1.xpose.msra.mxu0 0.0
        %970 = vmatprep.subr.mxu0 0.0
        %971 = vmatpush1.xpose.msra.mxu0 0.0
        %972 = vmatprep.subr.mxu0 0.0
        %973 = vmatpush1.xpose.msra.mxu0 0.0
        %974 = vmatprep.subr.mxu0 0.0
        %975 = vmatpush1.xpose.msra.mxu0 0.0
        %976 = vmatprep.subr.mxu0 0.0
        %977 = vmatpush1.xpose.msra.mxu0 0.0
        %978 = vmatprep.subr.mxu0 0.0
        %979 = vmatpush1.xpose.msra.mxu0 0.0
        %980 = vmatprep.subr.mxu0 0.0
        %981 = vmatpush1.xpose.msra.mxu0 0.0
        %982 = vmatprep.subr.mxu0 0.0
        %983 = vmatpush1.xpose.msra.mxu0 0.0
        %984 = vmatprep.subr.mxu0 0.0
        %985 = vmatpush1.xpose.msra.mxu0 0.0
        %986 = vmatprep.subr.mxu0 0.0
        %987 = vmatpush1.xpose.msra.mxu0 %v956
        %988 = vmatprep.subr.mxu0 0.0
        %989 = vmatpush1.xpose.msra.mxu0 %v954
        %990 = vmatprep.subr.mxu0 0.0
        %991 = vmatpush2.xpose.msra.mxu0 0.0
        %992 = vmatprep.subr.mxu0 0.0
        %993 = vmatpush2.xpose.msra.mxu0 0.0
        %994 = vmatprep.subr.mxu0 0.0
        %995 = vmatpush2.xpose.msra.mxu0 0.0
        %996 = vmatprep.subr.mxu0 0.0
        %997 = vmatpush2.xpose.msra.mxu0 0.0
        %998 = vmatprep.subr.mxu0 0.0
        %999 = vmatpush2.xpose.msra.mxu0 0.0
        %1000 = vmatprep.subr.mxu0 0.0
        %1001 = vmatpush2.xpose.msra.mxu0 0.0
        %1002 = vmatprep.subr.mxu0 0.0
        %1003 = vmatpush2.xpose.msra.mxu0 0.0
        %1004 = vmatprep.subr.mxu0 0.0
        %1005 = vmatpush2.xpose.msra.mxu0 0.0
        %1006 = vmatprep.subr.mxu0 0.0
        %1007 = vmatpush2.xpose.msra.mxu0 0.0
        %1008 = vmatprep.subr.mxu0 0.0
        %1009 = vmatpush2.xpose.msra.mxu0 0.0
        %1010 = vmatprep.subr.mxu0 0.0
        %1011 = vmatpush2.xpose.msra.mxu0 0.0
        %1012 = vmatprep.subr.mxu0 0.0
        %1013 = vmatpush2.xpose.msra.mxu0 0.0
        %1014 = vmatprep.subr.mxu0 0.0
        %1015 = vmatpush2.xpose.msra.mxu0 0.0
        %1016 = vmatprep.subr.mxu0 0.0
        %1017 = vmatpush2.xpose.msra.mxu0 0.0
        %1018 = vmatprep.subr.mxu0 0.0
        %1019 = vmatpush2.xpose.msra.mxu0 0.0
        %1020 = vmatprep.subr.mxu0 0.0
        %1021 = vmatpush2.xpose.msra.mxu0 0.0
        %1022 = vmatprep.mubr.f32.mxu0 0.0
        %1023 = vmatmul.mubr.f32.gmra.mxu0 %v952
        %v1024 = vpop.f32.mrf.mxu0
        %v1025 = vadd.f32 0.0, %v1024
        %v1026 = vpop.f32.mrf.mxu0
        %1027 = vdwg.mxu0
        %v1028 = vmul.f32 %v1025, 0.35355338
        %v1029 = vsel %vm682, %v1028, -inf
        %1030 = vmax.xlane.f32.xlu0 %v1029
        %v1031 = vpop.xlane.xlu0 %1030
        %v1032 = vsub.f32 %v1028, %v1031
        %v1033 = vmul.f32 %v1032, 1.442695
        %v1034 = vpow.pop %v1033
        %v1035 = vsel %vm682, %v1034, 0.0
        %1036 = vadd.xlane.f32.xlu0 %v1035
        %v1037 = vpop.xlane.xlu0 %1036
        %1038 = vrot.lane.b32.xlu0 %v593, 80
        %v1039 = vpop.permute.xlu0 %1038
        %1040 = vrot.lane.b32.xlu0 %v598, 80
        %v1041 = vpop.permute.xlu0 %1040
        %v1045 = vsel %vm682, %v1034, 0
        %1047 = vmatprep.subr.mxu0 0.0
        %1048 = vmatpush1.msra.mxu0 0.0
        %1049 = vmatprep.subr.mxu0 0.0
        %1050 = vmatpush1.msra.mxu0 0.0
        %1051 = vmatprep.subr.mxu0 0.0
        %1052 = vmatpush1.msra.mxu0 0.0
        %1053 = vmatprep.subr.mxu0 0.0
        %1054 = vmatpush1.msra.mxu0 0.0
        %1055 = vmatprep.subr.mxu0 0.0
        %1056 = vmatpush1.msra.mxu0 0.0
        %1057 = vmatprep.subr.mxu0 0.0
        %1058 = vmatpush1.msra.mxu0 0.0
        %1059 = vmatprep.subr.mxu0 0.0
        %1060 = vmatpush1.msra.mxu0 0.0
        %1061 = vmatprep.subr.mxu0 0.0
        %1062 = vmatpush1.msra.mxu0 0.0
        %1063 = vmatprep.subr.mxu0 0.0
        %1064 = vmatpush1.msra.mxu0 0.0
        %1065 = vmatprep.subr.mxu0 0.0
        %1066 = vmatpush1.msra.mxu0 0.0
        %1067 = vmatprep.subr.mxu0 0.0
        %1068 = vmatpush1.msra.mxu0 0.0
        %1069 = vmatprep.subr.mxu0 0.0
        %1070 = vmatpush1.msra.mxu0 0.0
        %1071 = vmatprep.subr.mxu0 0.0
        %1072 = vmatpush1.msra.mxu0 0.0
        %1073 = vmatprep.subr.mxu0 0.0
        %1074 = vmatpush1.msra.mxu0 0.0
        %1075 = vmatprep.subr.mxu0 0.0
        %1076 = vmatpush1.msra.mxu0 %v1041
        %1077 = vmatprep.subr.mxu0 0.0
        %1078 = vmatpush1.msra.mxu0 %v1039
        %1079 = vmatprep.subr.mxu0 0.0
        %1080 = vmatpush2.msra.mxu0 0.0
        %1081 = vmatprep.subr.mxu0 0.0
        %1082 = vmatpush2.msra.mxu0 0.0
        %1083 = vmatprep.subr.mxu0 0.0
        %1084 = vmatpush2.msra.mxu0 0.0
        %1085 = vmatprep.subr.mxu0 0.0
        %1086 = vmatpush2.msra.mxu0 0.0
        %1087 = vmatprep.subr.mxu0 0.0
        %1088 = vmatpush2.msra.mxu0 0.0
        %1089 = vmatprep.subr.mxu0 0.0
        %1090 = vmatpush2.msra.mxu0 0.0
        %1091 = vmatprep.subr.mxu0 0.0
        %1092 = vmatpush2.msra.mxu0 0.0
        %1093 = vmatprep.subr.mxu0 0.0
        %1094 = vmatpush2.msra.mxu0 0.0
        %1095 = vmatprep.subr.mxu0 0.0
        %1096 = vmatpush2.msra.mxu0 0.0
        %1097 = vmatprep.subr.mxu0 0.0
        %1098 = vmatpush2.msra.mxu0 0.0
        %1099 = vmatprep.subr.mxu0 0.0
        %1100 = vmatpush2.msra.mxu0 0.0
        %1101 = vmatprep.subr.mxu0 0.0
        %1102 = vmatpush2.msra.mxu0 0.0
        %1103 = vmatprep.subr.mxu0 0.0
        %1104 = vmatpush2.msra.mxu0 0.0
        %1105 = vmatprep.subr.mxu0 0.0
        %1106 = vmatpush2.msra.mxu0 0.0
        %1107 = vmatprep.subr.mxu0 0.0
        %1108 = vmatpush2.msra.mxu0 0.0
        %1109 = vmatprep.subr.mxu0 0.0
        %1110 = vmatpush2.msra.mxu0 0.0
        %1111 = vmatprep.mubr.f32.mxu0 0.0
        %1112 = vmatmul.mubr.f32.gmra.mxu0 %v1045
        %v1113 = vpop.f32.mrf.mxu0
        %v1114 = vadd.f32 0.0, %v1113
        %v1115 = vpop.f32.mrf.mxu0
        %1116 = vdwg.mxu0
        %v1117 = vrcp.pop %v1037
        %v1118 = vmul.f32 %v1114, %v1117
        %1119 = vrot.lane.b32.xlu0 %v506, 104
        %v1120 = vpop.permute.xlu0 %1119
        %1121 = vrot.lane.b32.xlu0 %v593, 104
        %v1122 = vpop.permute.xlu0 %1121
        %1123 = vrot.lane.b32.xlu0 %v598, 104
        %v1124 = vpop.permute.xlu0 %1123
        %v1125 = vsel %vm601, %v1120, 0
        %v1127 = vsel %vm601, %v1122, 0
        %v1129 = vsel %vm601, %v1124, 0
        %1131 = vmatprep.subr.mxu0 0.0
        %1132 = vmatpush1.xpose.msra.mxu0 0.0
        %1133 = vmatprep.subr.mxu0 0.0
        %1134 = vmatpush1.xpose.msra.mxu0 0.0
        %1135 = vmatprep.subr.mxu0 0.0
        %1136 = vmatpush1.xpose.msra.mxu0 0.0
        %1137 = vmatprep.subr.mxu0 0.0
        %1138 = vmatpush1.xpose.msra.mxu0 0.0
        %1139 = vmatprep.subr.mxu0 0.0
        %1140 = vmatpush1.xpose.msra.mxu0 0.0
        %1141 = vmatprep.subr.mxu0 0.0
        %1142 = vmatpush1.xpose.msra.mxu0 0.0
        %1143 = vmatprep.subr.mxu0 0.0
        %1144 = vmatpush1.xpose.msra.mxu0 0.0
        %1145 = vmatprep.subr.mxu0 0.0
        %1146 = vmatpush1.xpose.msra.mxu0 0.0
        %1147 = vmatprep.subr.mxu0 0.0
        %1148 = vmatpush1.xpose.msra.mxu0 0.0
        %1149 = vmatprep.subr.mxu0 0.0
        %1150 = vmatpush1.xpose.msra.mxu0 0.0
        %1151 = vmatprep.subr.mxu0 0.0
        %1152 = vmatpush1.xpose.msra.mxu0 0.0
        %1153 = vmatprep.subr.mxu0 0.0
        %1154 = vmatpush1.xpose.msra.mxu0 0.0
        %1155 = vmatprep.subr.mxu0 0.0
        %1156 = vmatpush1.xpose.msra.mxu0 0.0
        %1157 = vmatprep.subr.mxu0 0.0
        %1158 = vmatpush1.xpose.msra.mxu0 0.0
        %1159 = vmatprep.subr.mxu0 0.0
        %1160 = vmatpush1.xpose.msra.mxu0 %v1129
        %1161 = vmatprep.subr.mxu0 0.0
        %1162 = vmatpush1.xpose.msra.mxu0 %v1127
        %1163 = vmatprep.subr.mxu0 0.0
        %1164 = vmatpush2.xpose.msra.mxu0 0.0
        %1165 = vmatprep.subr.mxu0 0.0
        %1166 = vmatpush2.xpose.msra.mxu0 0.0
        %1167 = vmatprep.subr.mxu0 0.0
        %1168 = vmatpush2.xpose.msra.mxu0 0.0
        %1169 = vmatprep.subr.mxu0 0.0
        %1170 = vmatpush2.xpose.msra.mxu0 0.0
        %1171 = vmatprep.subr.mxu0 0.0
        %1172 = vmatpush2.xpose.msra.mxu0 0.0
        %1173 = vmatprep.subr.mxu0 0.0
        %1174 = vmatpush2.xpose.msra.mxu0 0.0
        %1175 = vmatprep.subr.mxu0 0.0
        %1176 = vmatpush2.xpose.msra.mxu0 0.0
        %1177 = vmatprep.subr.mxu0 0.0
        %1178 = vmatpush2.xpose.msra.mxu0 0.0
        %1179 = vmatprep.subr.mxu0 0.0
        %1180 = vmatpush2.xpose.msra.mxu0 0.0
        %1181 = vmatprep.subr.mxu0 0.0
        %1182 = vmatpush2.xpose.msra.mxu0 0.0
        %1183 = vmatprep.subr.mxu0 0.0
        %1184 = vmatpush2.xpose.msra.mxu0 0.0
        %1185 = vmatprep.subr.mxu0 0.0
        %1186 = vmatpush2.xpose.msra.mxu0 0.0
        %1187 = vmatprep.subr.mxu0 0.0
        %1188 = vmatpush2.xpose.msra.mxu0 0.0
        %1189 = vmatprep.subr.mxu0 0.0
        %1190 = vmatpush2.xpose.msra.mxu0 0.0
        %1191 = vmatprep.subr.mxu0 0.0
        %1192 = vmatpush2.xpose.msra.mxu0 0.0
        %1193 = vmatprep.subr.mxu0 0.0
        %1194 = vmatpush2.xpose.msra.mxu0 0.0
        %1195 = vmatprep.mubr.f32.mxu0 0.0
        %1196 = vmatmul.mubr.f32.gmra.mxu0 %v1125
        %v1197 = vpop.f32.mrf.mxu0
        %v1198 = vadd.f32 0.0, %v1197
        %v1199 = vpop.f32.mrf.mxu0
        %1200 = vdwg.mxu0
        %v1201 = vmul.f32 %v1198, 0.35355338
        %v1202 = vsel %vm682, %v1201, -inf
        %1203 = vmax.xlane.f32.xlu0 %v1202
        %v1204 = vpop.xlane.xlu0 %1203
        %v1205 = vsub.f32 %v1201, %v1204
        %v1206 = vmul.f32 %v1205, 1.442695
        %v1207 = vpow.pop %v1206
        %v1208 = vsel %vm682, %v1207, 0.0
        %1209 = vadd.xlane.f32.xlu0 %v1208
        %v1210 = vpop.xlane.xlu0 %1209
        %1211 = vrot.lane.b32.xlu0 %v593, 72
        %v1212 = vpop.permute.xlu0 %1211
        %1213 = vrot.lane.b32.xlu0 %v598, 72
        %v1214 = vpop.permute.xlu0 %1213
        %v1218 = vsel %vm682, %v1207, 0
        %1220 = vmatprep.subr.mxu0 0.0
        %1221 = vmatpush1.msra.mxu0 0.0
        %1222 = vmatprep.subr.mxu0 0.0
        %1223 = vmatpush1.msra.mxu0 0.0
        %1224 = vmatprep.subr.mxu0 0.0
        %1225 = vmatpush1.msra.mxu0 0.0
        %1226 = vmatprep.subr.mxu0 0.0
        %1227 = vmatpush1.msra.mxu0 0.0
        %1228 = vmatprep.subr.mxu0 0.0
        %1229 = vmatpush1.msra.mxu0 0.0
        %1230 = vmatprep.subr.mxu0 0.0
        %1231 = vmatpush1.msra.mxu0 0.0
        %1232 = vmatprep.subr.mxu0 0.0
        %1233 = vmatpush1.msra.mxu0 0.0
        %1234 = vmatprep.subr.mxu0 0.0
        %1235 = vmatpush1.msra.mxu0 0.0
        %1236 = vmatprep.subr.mxu0 0.0
        %1237 = vmatpush1.msra.mxu0 0.0
        %1238 = vmatprep.subr.mxu0 0.0
        %1239 = vmatpush1.msra.mxu0 0.0
        %1240 = vmatprep.subr.mxu0 0.0
        %1241 = vmatpush1.msra.mxu0 0.0
        %1242 = vmatprep.subr.mxu0 0.0
        %1243 = vmatpush1.msra.mxu0 0.0
        %1244 = vmatprep.subr.mxu0 0.0
        %1245 = vmatpush1.msra.mxu0 0.0
        %1246 = vmatprep.subr.mxu0 0.0
        %1247 = vmatpush1.msra.mxu0 0.0
        %1248 = vmatprep.subr.mxu0 0.0
        %1249 = vmatpush1.msra.mxu0 %v1214
        %1250 = vmatprep.subr.mxu0 0.0
        %1251 = vmatpush1.msra.mxu0 %v1212
        %1252 = vmatprep.subr.mxu0 0.0
        %1253 = vmatpush2.msra.mxu0 0.0
        %1254 = vmatprep.subr.mxu0 0.0
        %1255 = vmatpush2.msra.mxu0 0.0
        %1256 = vmatprep.subr.mxu0 0.0
        %1257 = vmatpush2.msra.mxu0 0.0
        %1258 = vmatprep.subr.mxu0 0.0
        %1259 = vmatpush2.msra.mxu0 0.0
        %1260 = vmatprep.subr.mxu0 0.0
        %1261 = vmatpush2.msra.mxu0 0.0
        %1262 = vmatprep.subr.mxu0 0.0
        %1263 = vmatpush2.msra.mxu0 0.0
        %1264 = vmatprep.subr.mxu0 0.0
        %1265 = vmatpush2.msra.mxu0 0.0
        %1266 = vmatprep.subr.mxu0 0.0
        %1267 = vmatpush2.msra.mxu0 0.0
        %1268 = vmatprep.subr.mxu0 0.0
        %1269 = vmatpush2.msra.mxu0 0.0
        %1270 = vmatprep.subr.mxu0 0.0
        %1271 = vmatpush2.msra.mxu0 0.0
        %1272 = vmatprep.subr.mxu0 0.0
        %1273 = vmatpush2.msra.mxu0 0.0
        %1274 = vmatprep.subr.mxu0 0.0
        %1275 = vmatpush2.msra.mxu0 0.0
        %1276 = vmatprep.subr.mxu0 0.0
        %1277 = vmatpush2.msra.mxu0 0.0
        %1278 = vmatprep.subr.mxu0 0.0
        %1279 = vmatpush2.msra.mxu0 0.0
        %1280 = vmatprep.subr.mxu0 0.0
        %1281 = vmatpush2.msra.mxu0 0.0
        %1282 = vmatprep.subr.mxu0 0.0
        %1283 = vmatpush2.msra.mxu0 0.0
        %1284 = vmatprep.mubr.f32.mxu0 0.0
        %1285 = vmatmul.mubr.f32.gmra.mxu0 %v1218
        %v1286 = vpop.f32.mrf.mxu0
        %v1287 = vadd.f32 0.0, %v1286
        %v1288 = vpop.f32.mrf.mxu0
        %1289 = vdwg.mxu0
        %v1290 = vrcp.pop %v1210
        %v1291 = vmul.f32 %v1287, %v1290
        %1293 = vrot.lane.b32.xlu0 %v945, 8
        %v1294 = vpop.permute.xlu0 %1293
        %1297 = vrot.lane.b32.xlu0 %v1118, 16
        %v1298 = vpop.permute.xlu0 %1297
        %1301 = vrot.lane.b32.xlu0 %v1291, 24
        %v1302 = vpop.permute.xlu0 %1301
        %v1304 = vsel %vm601, %v772, %v1294
        %v1305 = vsel %vm682, %v1304, %v1298
        %vm1306 = vcmask 195584
        %v1307 = vsel %vm1306, %v1305, %v1302
        %v1308 = vld [vmem:[#allocation10] sm:$0xff]
        %v1309 = vld [vmem:[#allocation10 + $0x8] sm:$0xff]
        %v1310 = vld [vmem:[#allocation10 + $0x10] sm:$0xff]
        %v1311 = vld [vmem:[#allocation10 + $0x18] sm:$0xff]
        %v1312 = vld [vmem:[%s7] sm:$0x1]
        %v1314 = vlaneseq
        %v1315 = vshrl.u32 %v1314, 7
        %v1316 = vsub.s32 0, %v1315
        %v1317 = vrot.slane %v1312, %v1316
        %v1320 = vsel %vm435, %v1307, 0
        %1322 = vmatprep.subr.mxu0 0.0
        %1323 = vmatpush1.msra.mxu0 0.0
        %1324 = vmatprep.subr.mxu0 0.0
        %1325 = vmatpush1.msra.mxu0 0.0
        %1326 = vmatprep.subr.mxu0 0.0
        %1327 = vmatpush1.msra.mxu0 0.0
        %1328 = vmatprep.subr.mxu0 0.0
        %1329 = vmatpush1.msra.mxu0 0.0
        %1330 = vmatprep.subr.mxu0 0.0
        %1331 = vmatpush1.msra.mxu0 0.0
        %1332 = vmatprep.subr.mxu0 0.0
        %1333 = vmatpush1.msra.mxu0 0.0
        %1334 = vmatprep.subr.mxu0 0.0
        %1335 = vmatpush1.msra.mxu0 0.0
        %1336 = vmatprep.subr.mxu0 0.0
        %1337 = vmatpush1.msra.mxu0 0.0
        %1338 = vmatprep.subr.mxu0 0.0
        %1339 = vmatpush1.msra.mxu0 0.0
        %1340 = vmatprep.subr.mxu0 0.0
        %1341 = vmatpush1.msra.mxu0 0.0
        %1342 = vmatprep.subr.mxu0 0.0
        %1343 = vmatpush1.msra.mxu0 0.0
        %1344 = vmatprep.subr.mxu0 0.0
        %1345 = vmatpush1.msra.mxu0 0.0
        %1346 = vmatprep.subr.mxu0 0.0
        %1347 = vmatpush1.msra.mxu0 %v1311
        %1348 = vmatprep.subr.mxu0 0.0
        %1349 = vmatpush1.msra.mxu0 %v1310
        %1350 = vmatprep.subr.mxu0 0.0
        %1351 = vmatpush1.msra.mxu0 %v1309
        %1352 = vmatprep.subr.mxu0 0.0
        %1353 = vmatpush1.msra.mxu0 %v1308
        %1354 = vmatprep.subr.mxu0 0.0
        %1355 = vmatpush2.msra.mxu0 0.0
        %1356 = vmatprep.subr.mxu0 0.0
        %1357 = vmatpush2.msra.mxu0 0.0
        %1358 = vmatprep.subr.mxu0 0.0
        %1359 = vmatpush2.msra.mxu0 0.0
        %1360 = vmatprep.subr.mxu0 0.0
        %1361 = vmatpush2.msra.mxu0 0.0
        %1362 = vmatprep.subr.mxu0 0.0
        %1363 = vmatpush2.msra.mxu0 0.0
        %1364 = vmatprep.subr.mxu0 0.0
        %1365 = vmatpush2.msra.mxu0 0.0
        %1366 = vmatprep.subr.mxu0 0.0
        %1367 = vmatpush2.msra.mxu0 0.0
        %1368 = vmatprep.subr.mxu0 0.0
        %1369 = vmatpush2.msra.mxu0 0.0
        %1370 = vmatprep.subr.mxu0 0.0
        %1371 = vmatpush2.msra.mxu0 0.0
        %1372 = vmatprep.subr.mxu0 0.0
        %1373 = vmatpush2.msra.mxu0 0.0
        %1374 = vmatprep.subr.mxu0 0.0
        %1375 = vmatpush2.msra.mxu0 0.0
        %1376 = vmatprep.subr.mxu0 0.0
        %1377 = vmatpush2.msra.mxu0 0.0
        %1378 = vmatprep.subr.mxu0 0.0
        %1379 = vmatpush2.msra.mxu0 0.0
        %1380 = vmatprep.subr.mxu0 0.0
        %1381 = vmatpush2.msra.mxu0 0.0
        %1382 = vmatprep.subr.mxu0 0.0
        %1383 = vmatpush2.msra.mxu0 0.0
        %1384 = vmatprep.subr.mxu0 0.0
        %1385 = vmatpush2.msra.mxu0 0.0
        %1386 = vmatprep.mubr.f32.mxu0 0.0
        %1387 = vmatmul.mubr.f32.gmra.mxu0 %v1320
        %v1388 = vpop.f32.mrf.mxu0
        %v1389 = vadd.f32 %v1317, %v1388
        %v1390 = vpop.f32.mrf.mxu0
        %1391 = vdwg.mxu0
        %1392 = vst.msk [vmem:[%s420] sm:$0xff] %vm435, %v1389
        %s1393 = sand.u32 %s231, 1
        %s1394 = scalar_lea.sflag [#allocation4], %s1393
        %s1395 = sand.u32 %s231, 1
        %s1396 = smul.addr %s1395, 8
        %s1397 = scalar_lea.vmem [#allocation11], %s1396
        // Predicated region
        $region73: #{tpu_custom_call.1} parent=51 // pred_check
          %p1398 = pneg %p241
        $region74: #{tpu_custom_call.1} parent=51 // pred_check_branch
          %1400 = sbr.rel (%p1398) target = $region76
        $region75: #{tpu_custom_call.1} parent=51 // pred_region
          %s1402 = ssub.s32 128, 128
          %1403 = vsyncadd %s1394, %s1402
          %s1404 = sadd.s32 %s34, %s33
          %s1405 = smul.addr %s1404, 128
          %s1406 = scalar_lea.hbm %s8, %s1405
          %s1408 = sshll.u32 %s1397, 4
          %s1409 = int_to_ptr.vmem [resolvable:$true] %s1408
          %1411 = dma.vmem_to_hbm [thread:$0]  %s1409, 128, %s1406, %s1394
        $region76: #{tpu_custom_call.1} parent=51 // pred_fallthru
          _
      $region52: #{tpu_custom_call.1} parent=5 // pred_fallthru
        _
      %p1412 = scmp.le.s32.totalorder 2, %s24
      // Predicated region
      $region77: #{tpu_custom_call.1} parent=5 // pred_check
        %p1413 = pneg %p1412
      $region78: #{tpu_custom_call.1} parent=5 // pred_check_branch
        %1415 = sbr.rel (%p1413) target = $region80
      $region79: #{tpu_custom_call.1} parent=5 // pred_region
        %s1416 = ssub.s32 %s24, 2
        // Predicated region
        $region81: #{tpu_custom_call.1} parent=79 // pred_check
          %p1417 = pneg %p247
        $region82: #{tpu_custom_call.1} parent=79 // pred_check_branch
          %1419 = sbr.rel (%p1417) target = $region84
        $region83: #{tpu_custom_call.1} parent=79 // pred_region
          %s1420 = sand.u32 %s232, 1
          %s1421 = scalar_lea.sflag [#allocation4], %s1420
          %s1422 = sand.u32 %s232, 1
          %s1423 = smul.addr %s1422, 8
          %s1424 = scalar_lea.vmem [#allocation11], %s1423
          %1425 = dma.done %s1421, 128
        $region84: #{tpu_custom_call.1} parent=79 // pred_fallthru
          _
      $region80: #{tpu_custom_call.1} parent=5 // pred_fallthru
        _
    $region6: #{tpu_custom_call.1} parent=1 // loop_footer
      %s28 = sadd.s32 1, %s24
    $region7: #{tpu_custom_call.1} parent=1 // loop_footer_branch
      %23 = sbr.rel target = $region3
    $region8: #{tpu_custom_call.1} parent=1 // loop_exit
      _
    %1426 = vsyncpa [#allocation3], 1
    %s1427 = scalar_lea.sflag [#allocation3], 1
    %1428 = vsyncpa %s1427, 1
    %1429 = vsyncpa [#allocation6], 1
    %s1430 = scalar_lea.sflag [#allocation6], 1
    %1431 = vsyncpa %s1430, 1
    %1432 = vsyncpa [#allocation9], 1
    %1433 = vsyncpa [#allocation4], 1
    %s1434 = scalar_lea.sflag [#allocation4], 1
    %1435 = vsyncpa %s1434, 1

</llo_original>
